<compile_context>
chip_gen: v7x
topology: tpu7x:2x2x1
jax: 0.10.0
libtpu: 0.0.40
codegen_flags: <defaults>
</compile_context>

<pallas_src>
import math

import jax
import jax.numpy as jnp
from jax import lax
from jax.experimental import pallas as pl
from jax.experimental.pallas import tpu as pltpu

K = 5                      # kernel_size
PAD = (K - 1) // 2         # 'same' padding for stride 1
EPS = 1e-5                 # torch.nn.LayerNorm default eps
INV_SQRT2 = 1.0 / math.sqrt(2.0)


def _round_up(x, m):
    return (x + m - 1) // m * m


# ---------------------------------------------------------------------------
# in-kernel helpers
# ---------------------------------------------------------------------------
def _erf(z):
    """Abramowitz & Stegun 7.1.26 (max abs err ~1.5e-7). exp lands on EUP."""
    a = jnp.abs(z)
    t = 1.0 / (1.0 + 0.3275911 * a)
    poly = t * (0.254829592 + t * (-0.284496736 + t * (1.421413741 +
           t * (-1.453152027 + t * 1.061405429))))
    e = 1.0 - poly * jnp.exp(-a * a)
    return jnp.where(z >= 0.0, e, -e)


def _gelu(y):
    return 0.5 * y * (1.0 + _erf(y * INV_SQRT2))


def _layer_norm(y, gamma_row, beta_row):
    mean = jnp.mean(y, axis=-1, keepdims=True)
    c = y - mean
    var = jnp.mean(c * c, axis=-1, keepdims=True)
    return c * lax.rsqrt(var + EPS) * gamma_row + beta_row


# ---------------------------------------------------------------------------
# fused kernel
# ---------------------------------------------------------------------------
def _make_kernel(*, tile_t, halo, t_actual, n_layers, n_groups, compute_dtype):
    ext = tile_t + 2 * halo

    def conv(a, row_mask, w, bias_row):
        """'same' Conv1d over the full window extent as a single MXU matmul.

        a:        (E, Cin) f32 window activation (edge rows may be halo/garbage)
        row_mask: (E, 1)   f32; reproduces torch's per-layer zero padding
        w:        (K*Cin, Cout) weight (k-major rows, matching the concat order)
        bias_row: (1, Cout) f32
        Taps use circular pltpu.roll along sublanes (XLU); wrapped edge rows are
        never inside the valid region (halo >= PAD * n_convs).
        """
        a = a * row_mask                               # per-layer zero padding
        taps = []
        for k in range(K):
            shift = (PAD - k) % ext
            taps.append(a if shift == 0 else pltpu.roll(a, shift=shift, axis=0))
        im2col = jnp.concatenate(taps, axis=-1).astype(compute_dtype)  # (E, K*Cin)
        return jnp.dot(im2col, w, preferred_element_type=jnp.float32) + bias_row

    def kernel(x_ref, w_in_ref, b_in_ref, w_mid_ref, b_mid_ref, g_mid_ref,
               be_mid_ref, w_out_ref, b_out_ref, o_ref):
        i = pl.program_id(1)                                   # T-tile index
        start = pl.multiple_of(i * tile_t, 8)
        a = x_ref[pl.ds(start, ext), :].astype(jnp.float32)    # (E, Cin)

        # Rows of this window mapping to global t in [0, T); everything else is
        # treated as zero at every conv input (per-layer 'same' zero padding).
        row_t = (i * tile_t - halo
                 + lax.broadcasted_iota(jnp.int32, (ext, 1), 0))
        row_mask = ((row_t >= 0) & (row_t < t_actual)).astype(jnp.float32)

        # in_proj (Conv1d, no norm/activation)
        cur = conv(a, row_mask, w_in_ref[...], b_in_ref[...])

        # conv1 ++ conv2 (middle_layer = Identity): 2*n_blocks residual groups.
        def group_body(g, cur):
            res = cur
            for l in range(n_layers):
                li = g * n_layers + l
                y = conv(cur, row_mask, w_mid_ref[li], b_mid_ref[li])
                # Dropout(p=0.0) == identity
                cur = _gelu(_layer_norm(y, g_mid_ref[li], be_mid_ref[li]))
            return res + cur                                   # residual add

        cur = lax.fori_loop(0, n_groups, group_body, cur)

        # out_proj (Cout zero-padded to a lane-dense multiple of 128)
        out = conv(cur, row_mask, w_out_ref[...], b_out_ref[...])
        o_ref[...] = out[halo:halo + tile_t, :].astype(o_ref.dtype)  # 8-aligned

    return kernel


# ---------------------------------------------------------------------------
# wrapper
# ---------------------------------------------------------------------------
def residual_conv_block_forward(x, kp, *, n_layers, out_channels, tile_t=1024):
    """Fused ResidualConvBlock forward.  x: (B, T, in_ch) channels-last."""
    B, T, cin = x.shape
    chid = kp["w_in"].shape[-1]
    cout_pad = kp["w_out"].shape[-1]               # already padded to 128*k
    L = kp["w_mid"].shape[0]                       # total mid ConvLayers
    assert L % n_layers == 0
    n_groups = L // n_layers                       # 2 * n_blocks
    n_convs = 2 + L                                # in_proj + mids + out_proj
    halo = _round_up(PAD * n_convs, 8)             # 8-aligned output slice
    compute_dtype = kp["w_in"].dtype

    tile_t = _round_up(max(8, min(tile_t, _round_up(T, 8))), 8)
    assert tile_t % 8 == 0 and halo % 8 == 0       # roll/slice alignment invariants
    t_pad = _round_up(T, tile_t)
    n_t = t_pad // tile_t
    ext = tile_t + 2 * halo

    # Single zero pad of the raw input: global halo + T rounding.  Per-layer
    # zero padding is handled in-kernel by the row mask.
    xp = jnp.pad(x, ((0, 0), (halo, halo + t_pad - T), (0, 0)))

    kernel = _make_kernel(tile_t=tile_t, halo=halo, t_actual=T,
                          n_layers=n_layers, n_groups=n_groups,
                          compute_dtype=compute_dtype)

    def _full(arr):
        zeros = (0,) * arr.ndim
        return pl.BlockSpec(arr.shape, lambda b, i: zeros)

    in_specs = [
        # Whole padded row per batch element, resident in VMEM (fetched once
        # per b); the kernel slices its haloed window with pl.ds.
        pl.BlockSpec((None, t_pad + 2 * halo, cin), lambda b, i: (b, 0, 0)),
        _full(kp["w_in"]), _full(kp["b_in"]),
        _full(kp["w_mid"]), _full(kp["b_mid"]),
        _full(kp["g_mid"]), _full(kp["be_mid"]),
        _full(kp["w_out"]), _full(kp["b_out"]),
    ]
    out_specs = pl.BlockSpec((None, tile_t, cout_pad), lambda b, i: (b, i, 0))

    # VMEM budget derived from actual buffer sizes (x2: pipeline double
    # buffering), clamped for v7x's 64 MiB physical VMEM.
    param_bytes = sum(int(kp[k].size) * kp[k].dtype.itemsize for k in kp)
    in_block_bytes = (t_pad + 2 * halo) * cin * x.dtype.itemsize
    out_block_bytes = tile_t * cout_pad * x.dtype.itemsize
    work_bytes = ext * (K * max(cin, chid) + 8 * chid) * 4
    vmem_est = 2 * (in_block_bytes + param_bytes + out_block_bytes) + work_bytes
    vmem_limit = int(min(max(2 * vmem_est, 16 * 1024 * 1024), 64 * 1024 * 1024))

    flops = 2 * B * n_t * ext * K * (cin * chid + L * chid * chid + chid * cout_pad)
    transcendentals = 2 * B * n_t * ext * chid * L
    bytes_accessed = int(xp.size * xp.dtype.itemsize
                         + B * t_pad * cout_pad * x.dtype.itemsize + param_bytes)

    out = pl.pallas_call(
        kernel,
        out_shape=jax.ShapeDtypeStruct((B, t_pad, cout_pad), x.dtype),
        grid=(B, n_t),
        in_specs=in_specs,
        out_specs=out_specs,
        compiler_params=pltpu.CompilerParams(
            dimension_semantics=("parallel", "parallel"),
            vmem_limit_bytes=vmem_limit),
        cost_estimate=pl.CostEstimate(flops=int(flops),
                                      transcendentals=int(transcendentals),
                                      bytes_accessed=bytes_accessed),
    )(xp, kp["w_in"], kp["b_in"], kp["w_mid"], kp["b_mid"],
      kp["g_mid"], kp["be_mid"], kp["w_out"], kp["b_out"])
    return out[:, :T, :out_channels]


# ---------------------------------------------------------------------------
# parameters (torch layout) + one-time relayout for the kernel
# ---------------------------------------------------------------------------
def make_torch_params(key, in_ch, hid, out_ch, n_layers, n_blocks):
    """Parameters with PyTorch shapes/dtypes: Conv1d weight (Cout, Cin, K), f32."""
    n_mid = 2 * n_blocks * n_layers
    keys = iter(jax.random.split(key, 4 + 4 * n_mid))

    def conv_param(cin, cout):
        bound = 1.0 / math.sqrt(cin * K)
        w = jax.random.uniform(next(keys), (cout, cin, K), jnp.float32, -bound, bound)
        b = jax.random.uniform(next(keys), (cout,), jnp.float32, -bound, bound)
        return w, b

    in_proj = conv_param(in_ch, hid)
    mid = []
    for _ in range(n_mid):
        w, b = conv_param(hid, hid)
        g = 1.0 + 0.1 * jax.random.normal(next(keys), (hid,), jnp.float32)
        be = 0.1 * jax.random.normal(next(keys), (hid,), jnp.float32)
        mid.append((w, b, g, be))
    out_proj = conv_param(hid, out_ch)
    return {"in_proj": in_proj, "mid": mid, "out_proj": out_proj}


def prepare_params(tp, compute_dtype=jnp.bfloat16):
    """One-time relayout hoisted out of the forward:
      * conv weights (Cout, Cin, K) -> (K*Cin, Cout) so each conv is ONE matmul
        against the in-kernel im2col operand, cast to the MXU compute dtype;
      * out_proj Cout zero-padded to a multiple of 128 (lane-dense stores);
      * biases / LayerNorm affine reshaped to (1, C) f32 rows and stacked."""
    def conv_w(w):
        cout, cin, k = w.shape
        return jnp.transpose(w, (2, 1, 0)).reshape(k * cin, cout).astype(compute_dtype)

    w_in, b_in = tp["in_proj"]
    w_out, b_out = tp["out_proj"]
    cout = w_out.shape[0]
    cout_pad = _round_up(cout, 128)
    w_out_k = jnp.pad(conv_w(w_out), ((0, 0), (0, cout_pad - cout)))
    b_out_p = jnp.pad(b_out, (0, cout_pad - cout)).reshape(1, -1).astype(jnp.float32)
    return {
        "w_in":  conv_w(w_in),
        "b_in":  b_in.reshape(1, -1).astype(jnp.float32),
        "w_mid": jnp.stack([conv_w(w) for (w, _, _, _) in tp["mid"]]),
        "b_mid": jnp.stack([b.reshape(1, -1).astype(jnp.float32)
                            for (_, b, _, _) in tp["mid"]]),
        "g_mid": jnp.stack([g.reshape(1, -1).astype(jnp.float32)
                            for (_, _, g, _) in tp["mid"]]),
        "be_mid": jnp.stack([be.reshape(1, -1).astype(jnp.float32)
                             for (_, _, _, be) in tp["mid"]]),
        "w_out": w_out_k,
        "b_out": b_out_p,
    }


# ---------------------------------------------------------------------------
# plain-JAX f32 reference (torch semantics) for sanity checks
# ---------------------------------------------------------------------------
def _ref_conv(x, w, b):
    T = x.shape[1]
    xpad = jnp.pad(x, ((0, 0), (PAD, PAD), (0, 0)))
    wk = jnp.transpose(w, (2, 1, 0))
    acc = b[None, None, :].astype(jnp.float32)
    for k in range(K):
        acc = acc + jnp.einsum("btc,cd->btd", xpad[:, k:k + T, :], wk[k],
                               precision=jax.lax.Precision.HIGHEST)
    return acc


def _ref_conv_ln_gelu(x, w, b, g, be):
    y = _ref_conv(x, w, b)
    mean = y.mean(-1, keepdims=True)
    var = ((y - mean) ** 2).mean(-1, keepdims=True)
    y = (y - mean) / jnp.sqrt(var + EPS) * g + be
    return 0.5 * y * (1.0 + jax.lax.erf(y * INV_SQRT2))


def ref_forward(x, tp, n_layers):
    w, b = tp["in_proj"]
    x = _ref_conv(x, w, b)
    mid = tp["mid"]
    for gi in range(len(mid) // n_layers):
        y = x
        for l in range(n_layers):
            w, b, g, be = mid[gi * n_layers + l]
            y = _ref_conv_ln_gelu(y, w, b, g, be)
        x = x + y
    w, b = tp["out_proj"]
    return _ref_conv(x, w, b)


# ---------------------------------------------------------------------------
if __name__ == "__main__":
    fwd = jax.jit(residual_conv_block_forward,
                  static_argnames=("n_layers", "out_channels", "tile_t"))
    key = jax.random.PRNGKey(0)
    k1, k2, k3, k4 = jax.random.split(key, 4)

    # ---- small smoke test (bf16 MXU operands, single T tile) -------------
    B, T, in_ch, hid, out_ch = 2, 16, 4, 32, 4
    n_layers, n_blocks = 2, 2
    x = jax.random.normal(k1, (B, T, in_ch), jnp.float32)
    tp = make_torch_params(k2, in_ch, hid, out_ch, n_layers, n_blocks)
    out = fwd(x, prepare_params(tp, jnp.bfloat16),
              n_layers=n_layers, out_channels=out_ch, tile_t=256)
    jax.block_until_ready(out)
    ref = ref_forward(x, tp, n_layers)
    assert out.shape == ref.shape, (out.shape, ref.shape)
    err = float(jnp.max(jnp.abs(out - ref)))
    assert err < 1e-1, f"small bf16 test: max abs error {err}"

    # ---- multi-tile test: T not a multiple of tile_t, deeper block --------
    B, T, in_ch, hid, out_ch = 2, 200, 8, 64, 12
    n_layers, n_blocks = 2, 3
    x2 = jax.random.normal(k3, (B, T, in_ch), jnp.float32)
    tp2 = make_torch_params(k4, in_ch, hid, out_ch, n_layers, n_blocks)
    ref2 = ref_forward(x2, tp2, n_layers)

    # f32-operand kernel variant: tight check of halo / mask / tap bookkeeping
    out2 = fwd(x2, prepare_params(tp2, jnp.float32),
               n_layers=n_layers, out_channels=out_ch, tile_t=64)
    jax.block_until_ready(out2)
    assert out2.shape == ref2.shape, (out2.shape, ref2.shape)
    err2 = float(jnp.max(jnp.abs(out2 - ref2)))
    # Tolerance leaves margin for MXU f32 matmul pass count; any halo/mask/tap
    # logic error would be O(max|ref|) ~ O(1), far above this.
    assert err2 < 5e-2, f"multi-tile f32 test: max abs error {err2}"

    # production bf16 variant at the same (multi-tile) shape
    out3 = fwd(x2, prepare_params(tp2, jnp.bfloat16),
               n_layers=n_layers, out_channels=out_ch, tile_t=64)
    jax.block_until_ready(out3)
    err3 = float(jnp.max(jnp.abs(out3 - ref2)))
    assert err3 < 2e-1, f"multi-tile bf16 test: max abs error {err3}"

    print("KERNEL_OK")
</pallas_src>

<mosaic_0001>
module attributes {stable_mosaic.version = 11 : i64} {
  func.func @kernel(%arg0: i32, %arg1: i32, %arg2: memref<1x64x4xf32, #tpu.memory_space<vmem>>, %arg3: memref<20x32xbf16, #tpu.memory_space<vmem>>, %arg4: memref<1x32xf32, #tpu.memory_space<vmem>>, %arg5: memref<8x160x32xbf16, #tpu.memory_space<vmem>>, %arg6: memref<8x1x32xf32, #tpu.memory_space<vmem>>, %arg7: memref<8x1x32xf32, #tpu.memory_space<vmem>>, %arg8: memref<8x1x32xf32, #tpu.memory_space<vmem>>, %arg9: memref<160x128xbf16, #tpu.memory_space<vmem>>, %arg10: memref<1x128xf32, #tpu.memory_space<vmem>>, %arg11: memref<1x16x128xf32, #tpu.memory_space<vmem>>) attributes {dimension_semantics = [#tpu.dimension_semantics<parallel>, #tpu.dimension_semantics<parallel>], iteration_bounds = array<i64: 2, 1>, scalar_prefetch = 0 : i64, scratch_operands = 0 : i64, tpu.core_type = #tpu.core_type<tc>, window_params = [{transform_indices = @transform_0, window_bounds = array<i64: 1, 64, 4>}, {pipeline_mode = #tpu.pipeline_mode<synchronous>, transform_indices = @transform_1, window_bounds = array<i64: 20, 32>}, {pipeline_mode = #tpu.pipeline_mode<synchronous>, transform_indices = @transform_2, window_bounds = array<i64: 1, 32>}, {pipeline_mode = #tpu.pipeline_mode<synchronous>, transform_indices = @transform_3, window_bounds = array<i64: 8, 160, 32>}, {pipeline_mode = #tpu.pipeline_mode<synchronous>, transform_indices = @transform_4, window_bounds = array<i64: 8, 1, 32>}, {pipeline_mode = #tpu.pipeline_mode<synchronous>, transform_indices = @transform_5, window_bounds = array<i64: 8, 1, 32>}, {pipeline_mode = #tpu.pipeline_mode<synchronous>, transform_indices = @transform_6, window_bounds = array<i64: 8, 1, 32>}, {pipeline_mode = #tpu.pipeline_mode<synchronous>, transform_indices = @transform_7, window_bounds = array<i64: 160, 128>}, {pipeline_mode = #tpu.pipeline_mode<synchronous>, transform_indices = @transform_8, window_bounds = array<i64: 1, 128>}, {transform_indices = @transform_9, window_bounds = array<i64: 1, 16, 128>}]} {
    %c16_i32 = arith.constant 16 : i32
    %0 = arith.muli %arg1, %c16_i32 : i32
    %1 = tpu.assume_multiple %0, 8 : i32
    %c0 = arith.constant 0 : index
    %2 = arith.index_cast %1 : i32 to index
    %c0_0 = arith.constant 0 : index
    %3 = vector.load %arg2[%c0, %2, %c0_0] : memref<1x64x4xf32, #tpu.memory_space<vmem>>, vector<1x64x4xf32>
    %4 = vector.shape_cast %3 : vector<1x64x4xf32> to vector<64x4xf32>
    %c16_i32_1 = arith.constant 16 : i32
    %5 = arith.muli %arg1, %c16_i32_1 : i32
    %c24_i32 = arith.constant 24 : i32
    %6 = arith.subi %5, %c24_i32 : i32
    %7 = tpu.iota {dimensions = array<i32: 0>} : vector<64x1xi32>
    %8 = vector.broadcast %6 : i32 to vector<64x1xi32>
    %9 = arith.addi %8, %7 : vector<64x1xi32>
    %c0_i32 = arith.constant 0 : i32
    %10 = vector.broadcast %c0_i32 : i32 to vector<64x1xi32>
    %11 = arith.cmpi sge, %9, %10 : vector<64x1xi32>
    %c16_i32_2 = arith.constant 16 : i32
    %12 = vector.broadcast %c16_i32_2 : i32 to vector<64x1xi32>
    %13 = arith.cmpi slt, %9, %12 : vector<64x1xi32>
    %14 = arith.andi %11, %13 : vector<64x1xi1>
    %15 = arith.extui %14 : vector<64x1xi1> to vector<64x1xi32>
    %16 = arith.sitofp %15 : vector<64x1xi32> to vector<64x1xf32>
    %c0_3 = arith.constant 0 : index
    %c0_4 = arith.constant 0 : index
    %17 = vector.load %arg3[%c0_3, %c0_4] : memref<20x32xbf16, #tpu.memory_space<vmem>>, vector<20x32xbf16>
    %c0_5 = arith.constant 0 : index
    %c0_6 = arith.constant 0 : index
    %18 = vector.load %arg4[%c0_5, %c0_6] : memref<1x32xf32, #tpu.memory_space<vmem>>, vector<1x32xf32>
    %19 = vector.broadcast %16 : vector<64x1xf32> to vector<64x4xf32>
    %20 = arith.mulf %4, %19 : vector<64x4xf32>
    %c2_i32 = arith.constant 2 : i32
    %21 = tpu.dynamic_rotate %20 by %c2_i32 dim 0 : vector<64x4xf32>, i32 -> vector<64x4xf32>
    %c1_i32 = arith.constant 1 : i32
    %22 = tpu.dynamic_rotate %20 by %c1_i32 dim 0 : vector<64x4xf32>, i32 -> vector<64x4xf32>
    %c63_i32 = arith.constant 63 : i32
    %23 = tpu.dynamic_rotate %20 by %c63_i32 dim 0 : vector<64x4xf32>, i32 -> vector<64x4xf32>
    %c62_i32 = arith.constant 62 : i32
    %24 = tpu.dynamic_rotate %20 by %c62_i32 dim 0 : vector<64x4xf32>, i32 -> vector<64x4xf32>
    %25 = tpu.concatenate %21, %22, %20, %23, %24 in 1 : vector<64x4xf32>, vector<64x4xf32>, vector<64x4xf32>, vector<64x4xf32>, vector<64x4xf32> -> vector<64x20xf32>
    %26 = arith.truncf %25 : vector<64x20xf32> to vector<64x20xbf16>
    %cst = arith.constant dense<0.000000e+00> : vector<64x32xf32>
    %27 = tpu.matmul %26, %17, %cst {dimension_numbers = #tpu.dot_dimension_numbers<[1], [0], [0], [1], [0, 0, 1, 1], [], []>} : vector<64x20xbf16>, vector<20x32xbf16>, vector<64x32xf32> -> vector<64x32xf32>
    %28 = vector.broadcast %18 : vector<1x32xf32> to vector<64x32xf32>
    %29 = arith.addf %27, %28 : vector<64x32xf32>
    %c0_i32_7 = arith.constant 0 : i32
    %c4_i32 = arith.constant 4 : i32
    %30 = arith.addi %c0_i32_7, %c4_i32 : i32
    %c1_i32_8 = arith.constant 1 : i32
    %31 = scf.for %arg12 = %c0_i32_7 to %30 step %c1_i32_8 iter_args(%arg13 = %29) -> (vector<64x32xf32>)  : i32 {
      %c2_i32_22 = arith.constant 2 : i32
      %49 = arith.muli %arg12, %c2_i32_22 : i32
      %c0_i32_23 = arith.constant 0 : i32
      %50 = arith.addi %49, %c0_i32_23 : i32
      %51 = arith.index_cast %50 : i32 to index
      %c0_24 = arith.constant 0 : index
      %c0_25 = arith.constant 0 : index
      %52 = vector.load %arg5[%51, %c0_24, %c0_25] : memref<8x160x32xbf16, #tpu.memory_space<vmem>>, vector<1x160x32xbf16>
      %53 = vector.shape_cast %52 : vector<1x160x32xbf16> to vector<160x32xbf16>
      %54 = arith.index_cast %50 : i32 to index
      %c0_26 = arith.constant 0 : index
      %c0_27 = arith.constant 0 : index
      %55 = vector.load %arg6[%54, %c0_26, %c0_27] : memref<8x1x32xf32, #tpu.memory_space<vmem>>, vector<1x1x32xf32>
      %56 = vector.shape_cast %55 : vector<1x1x32xf32> to vector<1x32xf32>
      %57 = vector.broadcast %16 : vector<64x1xf32> to vector<64x32xf32>
      %58 = arith.mulf %arg13, %57 : vector<64x32xf32>
      %c2_i32_28 = arith.constant 2 : i32
      %59 = tpu.dynamic_rotate %58 by %c2_i32_28 dim 0 : vector<64x32xf32>, i32 -> vector<64x32xf32>
      %c1_i32_29 = arith.constant 1 : i32
      %60 = tpu.dynamic_rotate %58 by %c1_i32_29 dim 0 : vector<64x32xf32>, i32 -> vector<64x32xf32>
      %c63_i32_30 = arith.constant 63 : i32
      %61 = tpu.dynamic_rotate %58 by %c63_i32_30 dim 0 : vector<64x32xf32>, i32 -> vector<64x32xf32>
      %c62_i32_31 = arith.constant 62 : i32
      %62 = tpu.dynamic_rotate %58 by %c62_i32_31 dim 0 : vector<64x32xf32>, i32 -> vector<64x32xf32>
      %63 = tpu.concatenate %59, %60, %58, %61, %62 in 1 : vector<64x32xf32>, vector<64x32xf32>, vector<64x32xf32>, vector<64x32xf32>, vector<64x32xf32> -> vector<64x160xf32>
      %64 = arith.truncf %63 : vector<64x160xf32> to vector<64x160xbf16>
      %cst_32 = arith.constant dense<0.000000e+00> : vector<64x32xf32>
      %65 = tpu.matmul %64, %53, %cst_32 {dimension_numbers = #tpu.dot_dimension_numbers<[1], [0], [0], [1], [0, 0, 1, 1], [], []>} : vector<64x160xbf16>, vector<160x32xbf16>, vector<64x32xf32> -> vector<64x32xf32>
      %66 = vector.broadcast %56 : vector<1x32xf32> to vector<64x32xf32>
      %67 = arith.addf %65, %66 : vector<64x32xf32>
      %68 = arith.index_cast %50 : i32 to index
      %c0_33 = arith.constant 0 : index
      %c0_34 = arith.constant 0 : index
      %69 = vector.load %arg7[%68, %c0_33, %c0_34] : memref<8x1x32xf32, #tpu.memory_space<vmem>>, vector<1x1x32xf32>
      %70 = vector.shape_cast %69 : vector<1x1x32xf32> to vector<1x32xf32>
      %71 = arith.index_cast %50 : i32 to index
      %c0_35 = arith.constant 0 : index
      %c0_36 = arith.constant 0 : index
      %72 = vector.load %arg8[%71, %c0_35, %c0_36] : memref<8x1x32xf32, #tpu.memory_space<vmem>>, vector<1x1x32xf32>
      %73 = vector.shape_cast %72 : vector<1x1x32xf32> to vector<1x32xf32>
      %cst_37 = arith.constant dense<0.000000e+00> : vector<64xf32>
      %74 = vector.multi_reduction <add>, %67, %cst_37 [1] : vector<64x32xf32> to vector<64xf32>
      %75 = vector.shape_cast %74 : vector<64xf32> to vector<64x1xf32>
      %cst_38 = arith.constant 3.200000e+01 : f32
      %76 = vector.broadcast %cst_38 : f32 to vector<64x1xf32>
      %77 = arith.divf %75, %76 : vector<64x1xf32>
      %78 = vector.broadcast %77 : vector<64x1xf32> to vector<64x32xf32>
      %79 = arith.subf %67, %78 : vector<64x32xf32>
      %80 = arith.mulf %79, %79 : vector<64x32xf32>
      %cst_39 = arith.constant dense<0.000000e+00> : vector<64xf32>
      %81 = vector.multi_reduction <add>, %80, %cst_39 [1] : vector<64x32xf32> to vector<64xf32>
      %82 = vector.shape_cast %81 : vector<64xf32> to vector<64x1xf32>
      %cst_40 = arith.constant 3.200000e+01 : f32
      %83 = vector.broadcast %cst_40 : f32 to vector<64x1xf32>
      %84 = arith.divf %82, %83 : vector<64x1xf32>
      %cst_41 = arith.constant 9.99999974E-6 : f32
      %85 = vector.broadcast %cst_41 : f32 to vector<64x1xf32>
      %86 = arith.addf %84, %85 : vector<64x1xf32>
      %87 = math.rsqrt %86 : vector<64x1xf32>
      %88 = vector.broadcast %87 : vector<64x1xf32> to vector<64x32xf32>
      %89 = arith.mulf %79, %88 : vector<64x32xf32>
      %90 = vector.broadcast %70 : vector<1x32xf32> to vector<64x32xf32>
      %91 = arith.mulf %89, %90 : vector<64x32xf32>
      %92 = vector.broadcast %73 : vector<1x32xf32> to vector<64x32xf32>
      %93 = arith.addf %91, %92 : vector<64x32xf32>
      %cst_42 = arith.constant 5.000000e-01 : f32
      %94 = vector.broadcast %cst_42 : f32 to vector<64x32xf32>
      %95 = arith.mulf %94, %93 : vector<64x32xf32>
      %cst_43 = arith.constant 0.707106769 : f32
      %96 = vector.broadcast %cst_43 : f32 to vector<64x32xf32>
      %97 = arith.mulf %93, %96 : vector<64x32xf32>
      %98 = math.absf %97 : vector<64x32xf32>
      %cst_44 = arith.constant 0.327591091 : f32
      %99 = vector.broadcast %cst_44 : f32 to vector<64x32xf32>
      %100 = arith.mulf %99, %98 : vector<64x32xf32>
      %cst_45 = arith.constant 1.000000e+00 : f32
      %101 = vector.broadcast %cst_45 : f32 to vector<64x32xf32>
      %102 = arith.addf %101, %100 : vector<64x32xf32>
      %cst_46 = arith.constant 1.000000e+00 : f32
      %103 = vector.broadcast %cst_46 : f32 to vector<64x32xf32>
      %104 = arith.divf %103, %102 : vector<64x32xf32>
      %cst_47 = arith.constant 1.06140542 : f32
      %105 = vector.broadcast %cst_47 : f32 to vector<64x32xf32>
      %106 = arith.mulf %104, %105 : vector<64x32xf32>
      %cst_48 = arith.constant -1.45315206 : f32
      %107 = vector.broadcast %cst_48 : f32 to vector<64x32xf32>
      %108 = arith.addf %107, %106 : vector<64x32xf32>
      %109 = arith.mulf %104, %108 : vector<64x32xf32>
      %cst_49 = arith.constant 1.42141378 : f32
      %110 = vector.broadcast %cst_49 : f32 to vector<64x32xf32>
      %111 = arith.addf %110, %109 : vector<64x32xf32>
      %112 = arith.mulf %104, %111 : vector<64x32xf32>
      %cst_50 = arith.constant -0.284496725 : f32
      %113 = vector.broadcast %cst_50 : f32 to vector<64x32xf32>
      %114 = arith.addf %113, %112 : vector<64x32xf32>
      %115 = arith.mulf %104, %114 : vector<64x32xf32>
      %cst_51 = arith.constant 0.254829586 : f32
      %116 = vector.broadcast %cst_51 : f32 to vector<64x32xf32>
      %117 = arith.addf %116, %115 : vector<64x32xf32>
      %118 = arith.mulf %104, %117 : vector<64x32xf32>
      %cst_52 = arith.constant 0.000000e+00 : f32
      %119 = vector.broadcast %cst_52 : f32 to vector<64x32xf32>
      %120 = arith.subf %119, %98 : vector<64x32xf32>
      %121 = arith.mulf %120, %98 : vector<64x32xf32>
      %122 = math.exp %121 : vector<64x32xf32>
      %123 = arith.mulf %118, %122 : vector<64x32xf32>
      %cst_53 = arith.constant 1.000000e+00 : f32
      %124 = vector.broadcast %cst_53 : f32 to vector<64x32xf32>
      %125 = arith.subf %124, %123 : vector<64x32xf32>
      %cst_54 = arith.constant 0.000000e+00 : f32
      %126 = vector.broadcast %cst_54 : f32 to vector<64x32xf32>
      %127 = arith.cmpf oge, %97, %126 : vector<64x32xf32>
      %cst_55 = arith.constant 0.000000e+00 : f32
      %128 = vector.broadcast %cst_55 : f32 to vector<64x32xf32>
      %129 = arith.subf %128, %125 : vector<64x32xf32>
      %130 = arith.select %127, %125, %129 : vector<64x32xi1>, vector<64x32xf32>
      %cst_56 = arith.constant 1.000000e+00 : f32
      %131 = vector.broadcast %cst_56 : f32 to vector<64x32xf32>
      %132 = arith.addf %131, %130 : vector<64x32xf32>
      %133 = arith.mulf %95, %132 : vector<64x32xf32>
      %c2_i32_57 = arith.constant 2 : i32
      %134 = arith.muli %arg12, %c2_i32_57 : i32
      %c1_i32_58 = arith.constant 1 : i32
      %135 = arith.addi %134, %c1_i32_58 : i32
      %136 = arith.index_cast %135 : i32 to index
      %c0_59 = arith.constant 0 : index
      %c0_60 = arith.constant 0 : index
      %137 = vector.load %arg5[%136, %c0_59, %c0_60] : memref<8x160x32xbf16, #tpu.memory_space<vmem>>, vector<1x160x32xbf16>
      %138 = vector.shape_cast %137 : vector<1x160x32xbf16> to vector<160x32xbf16>
      %139 = arith.index_cast %135 : i32 to index
      %c0_61 = arith.constant 0 : index
      %c0_62 = arith.constant 0 : index
      %140 = vector.load %arg6[%139, %c0_61, %c0_62] : memref<8x1x32xf32, #tpu.memory_space<vmem>>, vector<1x1x32xf32>
      %141 = vector.shape_cast %140 : vector<1x1x32xf32> to vector<1x32xf32>
      %142 = vector.broadcast %16 : vector<64x1xf32> to vector<64x32xf32>
      %143 = arith.mulf %133, %142 : vector<64x32xf32>
      %c2_i32_63 = arith.constant 2 : i32
      %144 = tpu.dynamic_rotate %143 by %c2_i32_63 dim 0 : vector<64x32xf32>, i32 -> vector<64x32xf32>
      %c1_i32_64 = arith.constant 1 : i32
      %145 = tpu.dynamic_rotate %143 by %c1_i32_64 dim 0 : vector<64x32xf32>, i32 -> vector<64x32xf32>
      %c63_i32_65 = arith.constant 63 : i32
      %146 = tpu.dynamic_rotate %143 by %c63_i32_65 dim 0 : vector<64x32xf32>, i32 -> vector<64x32xf32>
      %c62_i32_66 = arith.constant 62 : i32
      %147 = tpu.dynamic_rotate %143 by %c62_i32_66 dim 0 : vector<64x32xf32>, i32 -> vector<64x32xf32>
      %148 = tpu.concatenate %144, %145, %143, %146, %147 in 1 : vector<64x32xf32>, vector<64x32xf32>, vector<64x32xf32>, vector<64x32xf32>, vector<64x32xf32> -> vector<64x160xf32>
      %149 = arith.truncf %148 : vector<64x160xf32> to vector<64x160xbf16>
      %cst_67 = arith.constant dense<0.000000e+00> : vector<64x32xf32>
      %150 = tpu.matmul %149, %138, %cst_67 {dimension_numbers = #tpu.dot_dimension_numbers<[1], [0], [0], [1], [0, 0, 1, 1], [], []>} : vector<64x160xbf16>, vector<160x32xbf16>, vector<64x32xf32> -> vector<64x32xf32>
      %151 = vector.broadcast %141 : vector<1x32xf32> to vector<64x32xf32>
      %152 = arith.addf %150, %151 : vector<64x32xf32>
      %153 = arith.index_cast %135 : i32 to index
      %c0_68 = arith.constant 0 : index
      %c0_69 = arith.constant 0 : index
      %154 = vector.load %arg7[%153, %c0_68, %c0_69] : memref<8x1x32xf32, #tpu.memory_space<vmem>>, vector<1x1x32xf32>
      %155 = vector.shape_cast %154 : vector<1x1x32xf32> to vector<1x32xf32>
      %156 = arith.index_cast %135 : i32 to index
      %c0_70 = arith.constant 0 : index
      %c0_71 = arith.constant 0 : index
      %157 = vector.load %arg8[%156, %c0_70, %c0_71] : memref<8x1x32xf32, #tpu.memory_space<vmem>>, vector<1x1x32xf32>
      %158 = vector.shape_cast %157 : vector<1x1x32xf32> to vector<1x32xf32>
      %cst_72 = arith.constant dense<0.000000e+00> : vector<64xf32>
      %159 = vector.multi_reduction <add>, %152, %cst_72 [1] : vector<64x32xf32> to vector<64xf32>
      %160 = vector.shape_cast %159 : vector<64xf32> to vector<64x1xf32>
      %cst_73 = arith.constant 3.200000e+01 : f32
      %161 = vector.broadcast %cst_73 : f32 to vector<64x1xf32>
      %162 = arith.divf %160, %161 : vector<64x1xf32>
      %163 = vector.broadcast %162 : vector<64x1xf32> to vector<64x32xf32>
      %164 = arith.subf %152, %163 : vector<64x32xf32>
      %165 = arith.mulf %164, %164 : vector<64x32xf32>
      %cst_74 = arith.constant dense<0.000000e+00> : vector<64xf32>
      %166 = vector.multi_reduction <add>, %165, %cst_74 [1] : vector<64x32xf32> to vector<64xf32>
      %167 = vector.shape_cast %166 : vector<64xf32> to vector<64x1xf32>
      %cst_75 = arith.constant 3.200000e+01 : f32
      %168 = vector.broadcast %cst_75 : f32 to vector<64x1xf32>
      %169 = arith.divf %167, %168 : vector<64x1xf32>
      %cst_76 = arith.constant 9.99999974E-6 : f32
      %170 = vector.broadcast %cst_76 : f32 to vector<64x1xf32>
      %171 = arith.addf %169, %170 : vector<64x1xf32>
      %172 = math.rsqrt %171 : vector<64x1xf32>
      %173 = vector.broadcast %172 : vector<64x1xf32> to vector<64x32xf32>
      %174 = arith.mulf %164, %173 : vector<64x32xf32>
      %175 = vector.broadcast %155 : vector<1x32xf32> to vector<64x32xf32>
      %176 = arith.mulf %174, %175 : vector<64x32xf32>
      %177 = vector.broadcast %158 : vector<1x32xf32> to vector<64x32xf32>
      %178 = arith.addf %176, %177 : vector<64x32xf32>
      %cst_77 = arith.constant 5.000000e-01 : f32
      %179 = vector.broadcast %cst_77 : f32 to vector<64x32xf32>
      %180 = arith.mulf %179, %178 : vector<64x32xf32>
      %cst_78 = arith.constant 0.707106769 : f32
      %181 = vector.broadcast %cst_78 : f32 to vector<64x32xf32>
      %182 = arith.mulf %178, %181 : vector<64x32xf32>
      %183 = math.absf %182 : vector<64x32xf32>
      %cst_79 = arith.constant 0.327591091 : f32
      %184 = vector.broadcast %cst_79 : f32 to vector<64x32xf32>
      %185 = arith.mulf %184, %183 : vector<64x32xf32>
      %cst_80 = arith.constant 1.000000e+00 : f32
      %186 = vector.broadcast %cst_80 : f32 to vector<64x32xf32>
      %187 = arith.addf %186, %185 : vector<64x32xf32>
      %cst_81 = arith.constant 1.000000e+00 : f32
      %188 = vector.broadcast %cst_81 : f32 to vector<64x32xf32>
      %189 = arith.divf %188, %187 : vector<64x32xf32>
      %cst_82 = arith.constant 1.06140542 : f32
      %190 = vector.broadcast %cst_82 : f32 to vector<64x32xf32>
      %191 = arith.mulf %189, %190 : vector<64x32xf32>
      %cst_83 = arith.constant -1.45315206 : f32
      %192 = vector.broadcast %cst_83 : f32 to vector<64x32xf32>
      %193 = arith.addf %192, %191 : vector<64x32xf32>
      %194 = arith.mulf %189, %193 : vector<64x32xf32>
      %cst_84 = arith.constant 1.42141378 : f32
      %195 = vector.broadcast %cst_84 : f32 to vector<64x32xf32>
      %196 = arith.addf %195, %194 : vector<64x32xf32>
      %197 = arith.mulf %189, %196 : vector<64x32xf32>
      %cst_85 = arith.constant -0.284496725 : f32
      %198 = vector.broadcast %cst_85 : f32 to vector<64x32xf32>
      %199 = arith.addf %198, %197 : vector<64x32xf32>
      %200 = arith.mulf %189, %199 : vector<64x32xf32>
      %cst_86 = arith.constant 0.254829586 : f32
      %201 = vector.broadcast %cst_86 : f32 to vector<64x32xf32>
      %202 = arith.addf %201, %200 : vector<64x32xf32>
      %203 = arith.mulf %189, %202 : vector<64x32xf32>
      %cst_87 = arith.constant 0.000000e+00 : f32
      %204 = vector.broadcast %cst_87 : f32 to vector<64x32xf32>
      %205 = arith.subf %204, %183 : vector<64x32xf32>
      %206 = arith.mulf %205, %183 : vector<64x32xf32>
      %207 = math.exp %206 : vector<64x32xf32>
      %208 = arith.mulf %203, %207 : vector<64x32xf32>
      %cst_88 = arith.constant 1.000000e+00 : f32
      %209 = vector.broadcast %cst_88 : f32 to vector<64x32xf32>
      %210 = arith.subf %209, %208 : vector<64x32xf32>
      %cst_89 = arith.constant 0.000000e+00 : f32
      %211 = vector.broadcast %cst_89 : f32 to vector<64x32xf32>
      %212 = arith.cmpf oge, %182, %211 : vector<64x32xf32>
      %cst_90 = arith.constant 0.000000e+00 : f32
      %213 = vector.broadcast %cst_90 : f32 to vector<64x32xf32>
      %214 = arith.subf %213, %210 : vector<64x32xf32>
      %215 = arith.select %212, %210, %214 : vector<64x32xi1>, vector<64x32xf32>
      %cst_91 = arith.constant 1.000000e+00 : f32
      %216 = vector.broadcast %cst_91 : f32 to vector<64x32xf32>
      %217 = arith.addf %216, %215 : vector<64x32xf32>
      %218 = arith.mulf %180, %217 : vector<64x32xf32>
      %219 = arith.addf %arg13, %218 : vector<64x32xf32>
      scf.yield %219 : vector<64x32xf32>
    }
    %c4_i32_9 = arith.constant 4 : i32
    %c0_10 = arith.constant 0 : index
    %c0_11 = arith.constant 0 : index
    %32 = vector.load %arg9[%c0_10, %c0_11] : memref<160x128xbf16, #tpu.memory_space<vmem>>, vector<160x128xbf16>
    %c0_12 = arith.constant 0 : index
    %c0_13 = arith.constant 0 : index
    %33 = vector.load %arg10[%c0_12, %c0_13] : memref<1x128xf32, #tpu.memory_space<vmem>>, vector<1x128xf32>
    %34 = vector.broadcast %16 : vector<64x1xf32> to vector<64x32xf32>
    %35 = arith.mulf %31, %34 : vector<64x32xf32>
    %c2_i32_14 = arith.constant 2 : i32
    %36 = tpu.dynamic_rotate %35 by %c2_i32_14 dim 0 : vector<64x32xf32>, i32 -> vector<64x32xf32>
    %c1_i32_15 = arith.constant 1 : i32
    %37 = tpu.dynamic_rotate %35 by %c1_i32_15 dim 0 : vector<64x32xf32>, i32 -> vector<64x32xf32>
    %c63_i32_16 = arith.constant 63 : i32
    %38 = tpu.dynamic_rotate %35 by %c63_i32_16 dim 0 : vector<64x32xf32>, i32 -> vector<64x32xf32>
    %c62_i32_17 = arith.constant 62 : i32
    %39 = tpu.dynamic_rotate %35 by %c62_i32_17 dim 0 : vector<64x32xf32>, i32 -> vector<64x32xf32>
    %40 = tpu.concatenate %36, %37, %35, %38, %39 in 1 : vector<64x32xf32>, vector<64x32xf32>, vector<64x32xf32>, vector<64x32xf32>, vector<64x32xf32> -> vector<64x160xf32>
    %41 = arith.truncf %40 : vector<64x160xf32> to vector<64x160xbf16>
    %cst_18 = arith.constant dense<0.000000e+00> : vector<64x128xf32>
    %42 = tpu.matmul %41, %32, %cst_18 {dimension_numbers = #tpu.dot_dimension_numbers<[1], [0], [0], [1], [0, 0, 1, 1], [], []>} : vector<64x160xbf16>, vector<160x128xbf16>, vector<64x128xf32> -> vector<64x128xf32>
    %43 = vector.broadcast %33 : vector<1x128xf32> to vector<64x128xf32>
    %44 = arith.addf %42, %43 : vector<64x128xf32>
    %45 = vector.extract_strided_slice %44 {offsets = [24, 0], sizes = [16, 128], strides = [1, 1]} : vector<64x128xf32> to vector<16x128xf32>
    %c0_19 = arith.constant 0 : index
    %c0_20 = arith.constant 0 : index
    %c0_21 = arith.constant 0 : index
    %46 = vector.load %arg11[%c0_19, %c0_20, %c0_21] : memref<1x16x128xf32, #tpu.memory_space<vmem>>, vector<1x16x128xf32>
    %47 = vector.shape_cast %46 : vector<1x16x128xf32> to vector<16x128xf32>
    %48 = vector.shape_cast %45 : vector<16x128xf32> to vector<1x16x128xf32>
    tpu.vector_store %arg11[%c0_19, %c0_20, %c0_21], %48 {strides = array<i32>} : memref<1x16x128xf32, #tpu.memory_space<vmem>>, vector<1x16x128xf32>,
    return
  }
  func.func @transform_0(%arg0: i32, %arg1: i32) -> (i32, i32, i32) {
    %c0_i32 = arith.constant 0 : i32
    %c0_i32_0 = arith.constant 0 : i32
    %c0_i32_1 = arith.constant 0 : i32
    return %arg0, %c0_i32, %c0_i32_0 : i32, i32, i32
  }
  func.func @transform_1(%arg0: i32, %arg1: i32) -> (i32, i32) {
    %c0_i32 = arith.constant 0 : i32
    %c0_i32_0 = arith.constant 0 : i32
    %c0_i32_1 = arith.constant 0 : i32
    return %c0_i32, %c0_i32_0 : i32, i32
  }
  func.func @transform_2(%arg0: i32, %arg1: i32) -> (i32, i32) {
    %c0_i32 = arith.constant 0 : i32
    %c0_i32_0 = arith.constant 0 : i32
    %c0_i32_1 = arith.constant 0 : i32
    return %c0_i32, %c0_i32_0 : i32, i32
  }
  func.func @transform_3(%arg0: i32, %arg1: i32) -> (i32, i32, i32) {
    %c0_i32 = arith.constant 0 : i32
    %c0_i32_0 = arith.constant 0 : i32
    %c0_i32_1 = arith.constant 0 : i32
    %c0_i32_2 = arith.constant 0 : i32
    return %c0_i32, %c0_i32_0, %c0_i32_1 : i32, i32, i32
  }
  func.func @transform_4(%arg0: i32, %arg1: i32) -> (i32, i32, i32) {
    %c0_i32 = arith.constant 0 : i32
    %c0_i32_0 = arith.constant 0 : i32
    %c0_i32_1 = arith.constant 0 : i32
    %c0_i32_2 = arith.constant 0 : i32
    return %c0_i32, %c0_i32_0, %c0_i32_1 : i32, i32, i32
  }
  func.func @transform_5(%arg0: i32, %arg1: i32) -> (i32, i32, i32) {
    %c0_i32 = arith.constant 0 : i32
    %c0_i32_0 = arith.constant 0 : i32
    %c0_i32_1 = arith.constant 0 : i32
    %c0_i32_2 = arith.constant 0 : i32
    return %c0_i32, %c0_i32_0, %c0_i32_1 : i32, i32, i32
  }
  func.func @transform_6(%arg0: i32, %arg1: i32) -> (i32, i32, i32) {
    %c0_i32 = arith.constant 0 : i32
    %c0_i32_0 = arith.constant 0 : i32
    %c0_i32_1 = arith.constant 0 : i32
    %c0_i32_2 = arith.constant 0 : i32
    return %c0_i32, %c0_i32_0, %c0_i32_1 : i32, i32, i32
  }
  func.func @transform_7(%arg0: i32, %arg1: i32) -> (i32, i32) {
    %c0_i32 = arith.constant 0 : i32
    %c0_i32_0 = arith.constant 0 : i32
    %c0_i32_1 = arith.constant 0 : i32
    return %c0_i32, %c0_i32_0 : i32, i32
  }
  func.func @transform_8(%arg0: i32, %arg1: i32) -> (i32, i32) {
    %c0_i32 = arith.constant 0 : i32
    %c0_i32_0 = arith.constant 0 : i32
    %c0_i32_1 = arith.constant 0 : i32
    return %c0_i32, %c0_i32_0 : i32, i32
  }
  func.func @transform_9(%arg0: i32, %arg1: i32) -> (i32, i32, i32) {
    %c0_i32 = arith.constant 0 : i32
    %c0_i32_0 = arith.constant 0 : i32
    return %arg0, %arg1, %c0_i32 : i32, i32, i32
  }
}

</mosaic_0001>

<llo_original>
// kernel: residual_conv_block_forward.1
$region0: #{residual_conv_block_forward.1}
  #allocation0 [shape = 'u32[]', space=smem, size = 0x4, offset = 0x4, fixed_abs, tag = 'smem constant byte address 0x4 - core index']
  #allocation1 [shape = 'u32[144,128]{1,0:T(1,128)}', space=vmem, size = 0x12000, scoped, tag = 'internal scratch']
  %s0 = inlined_call_operand.vmem [shape: f32[2,64,4], index: 0, kind: input, shape index: {}]
  %s1 = inlined_call_operand.vmem [shape: bf16[20,32], index: 1, kind: input, shape index: {}]
  %s2 = inlined_call_operand.vmem [shape: f32[1,32], index: 2, kind: input, shape index: {}]
  %s3 = inlined_call_operand.vmem [shape: bf16[8,160,32], index: 3, kind: input, shape index: {}]
  %s4 = inlined_call_operand.vmem [shape: f32[8,1,32], index: 4, kind: input, shape index: {}]
  %s5 = inlined_call_operand.vmem [shape: f32[8,1,32], index: 5, kind: input, shape index: {}]
  %s6 = inlined_call_operand.vmem [shape: f32[8,1,32], index: 6, kind: input, shape index: {}]
  %s7 = inlined_call_operand.vmem [shape: bf16[160,128], index: 7, kind: input, shape index: {}]
  %s8 = inlined_call_operand.vmem [shape: f32[1,128], index: 8, kind: input, shape index: {}]
  %s9 = inlined_call_operand.vmem [shape: f32[2,16,128], index: 9, kind: output, shape index: {}]
  %s10 = sld [smem:[#allocation0]]
  $region76: #{residual_conv_block_forward.1} parent=0
    _
  %s12 = ssub.s32 1, %s10
  %s13 = scalar_select 0, %s12, %s10
  loop: start=0, step=1, limit=4
  $region2: #{residual_conv_block_forward.1} parent=0 // loop_pre_header
    _
  $region3: #{residual_conv_block_forward.1} parent=0 // loop_header
    %s15 = sphi 0, %s19
    %p16 = scmp.ge.s32.totalorder %s15, 4
    %s22 = sphi 0, %s34
    %s23 = sphi 0, %s30
    %s24 = sphi 0, %s22
    %s25 = sphi 0, %s23
    %s26 = sphi 0, %s24
    %s27 = sphi 0, %s25
    %s37 = sphi 0, %s39
    %s40 = sphi 0, %s37
    %s41 = sphi 0, %s40
    %s57 = sphi 0, %s41
    %s61 = sphi 0, %s61
    %s63 = sphi 0, %s61
    %s64 = sphi 0, %s63
    %s78 = sphi 0, %s64
    %s82 = sphi 0, %s82
    %s84 = sphi 0, %s82
    %s85 = sphi 0, %s84
    %s99 = sphi 0, %s85
    %s103 = sphi 0, %s103
    %s105 = sphi 0, %s103
    %s106 = sphi 0, %s105
    %s120 = sphi 0, %s106
    %s124 = sphi 0, %s124
    %s126 = sphi 0, %s124
    %s127 = sphi 0, %s126
    %s141 = sphi 0, %s127
    %s145 = sphi 0, %s145
    %s147 = sphi 0, %s145
    %s148 = sphi 0, %s147
    %s162 = sphi 0, %s148
    %s166 = sphi 0, %s166
    %s168 = sphi 0, %s166
    %s169 = sphi 0, %s168
    %s183 = sphi 0, %s169
    %s187 = sphi 0, %s187
    %s189 = sphi 0, %s187
    %s190 = sphi 0, %s189
    %s204 = sphi 0, %s190
    %s208 = sphi 0, %s208
    %s210 = sphi 0, %s208
    %s211 = sphi 0, %s210
    %s225 = sphi 0, %s211
    %s233 = sphi 0, %s235
    %s236 = sphi 0, %s233
    %s237 = sphi 0, %s236
    %s253 = sphi 0, %s237
  $region4: #{residual_conv_block_forward.1} parent=0 // loop_header_branch
    %18 = sbr.rel (%p16) target = $region8
  $region5: #{residual_conv_block_forward.1} parent=0 // loop_body
    %s20 = ssub.s32 %s15, 1
    %s21 = ssub.s32 %s15, 2
    %s28 = sadd.s32 1, %s23
    %p29 = scmp.ge.s32.totalorder %s28, 1
    %s30 = scalar_select %p29, 0, %s28
    %s31 = sadd.s32 1, %s22
    %s32 = scalar_select %p29, %s31, %s22
    %p33 = scmp.ge.s32.totalorder %s32, 2
    %s34 = scalar_select %p33, 0, %s32
    %s35 = ssub.s32 %s22, %s34
    %p36 = scmp.eq.s32.totalorder %s35, 0
    %s38 = sadd.s32 %s37, 1
    %s39 = scalar_select %p36, %s37, %s38
    %p42 = pneg %p36
    %p43 = scmp.eq.s32.totalorder %s15, 1
    %p44 = por %p42, %p43
    %p45 = scmp.ne.s32.totalorder %s37, %s40
    %p46 = scmp.eq.s32.totalorder %s15, 0
    %p47 = por %p45, %p46
    %p48 = scmp.ne.s32.totalorder %s37, %s40
    %p49 = scmp.eq.s32.totalorder %s20, 1
    %p50 = por %p48, %p49
    %p51 = scmp.ne.s32.totalorder %s40, %s41
    %p52 = scmp.eq.s32.totalorder %s20, 0
    %p53 = por %p51, %p52
    %p54 = scmp.ne.s32.totalorder %s40, %s41
    %p55 = scmp.eq.s32.totalorder %s21, 1
    %p56 = por %p54, %p55
    %p58 = scmp.ne.s32.totalorder %s41, %s57
    %p59 = scmp.eq.s32.totalorder %s21, 0
    %p60 = por %p58, %p59
    %s62 = sadd.s32 %s61, 1
    %p65 = scmp.eq.s32.totalorder %s15, 1
    %p66 = scmp.ne.s32.totalorder %s61, %s63
    %p67 = scmp.eq.s32.totalorder %s15, 0
    %p68 = por %p66, %p67
    %p69 = scmp.ne.s32.totalorder %s61, %s63
    %p70 = scmp.eq.s32.totalorder %s20, 1
    %p71 = por %p69, %p70
    %p72 = scmp.ne.s32.totalorder %s63, %s64
    %p73 = scmp.eq.s32.totalorder %s20, 0
    %p74 = por %p72, %p73
    %p75 = scmp.ne.s32.totalorder %s63, %s64
    %p76 = scmp.eq.s32.totalorder %s21, 1
    %p77 = por %p75, %p76
    %p79 = scmp.ne.s32.totalorder %s64, %s78
    %p80 = scmp.eq.s32.totalorder %s21, 0
    %p81 = por %p79, %p80
    %s83 = sadd.s32 %s82, 1
    %p86 = scmp.eq.s32.totalorder %s15, 1
    %p87 = scmp.ne.s32.totalorder %s82, %s84
    %p88 = scmp.eq.s32.totalorder %s15, 0
    %p89 = por %p87, %p88
    %p90 = scmp.ne.s32.totalorder %s82, %s84
    %p91 = scmp.eq.s32.totalorder %s20, 1
    %p92 = por %p90, %p91
    %p93 = scmp.ne.s32.totalorder %s84, %s85
    %p94 = scmp.eq.s32.totalorder %s20, 0
    %p95 = por %p93, %p94
    %p96 = scmp.ne.s32.totalorder %s84, %s85
    %p97 = scmp.eq.s32.totalorder %s21, 1
    %p98 = por %p96, %p97
    %p100 = scmp.ne.s32.totalorder %s85, %s99
    %p101 = scmp.eq.s32.totalorder %s21, 0
    %p102 = por %p100, %p101
    %s104 = sadd.s32 %s103, 1
    %p107 = scmp.eq.s32.totalorder %s15, 1
    %p108 = scmp.ne.s32.totalorder %s103, %s105
    %p109 = scmp.eq.s32.totalorder %s15, 0
    %p110 = por %p108, %p109
    %p111 = scmp.ne.s32.totalorder %s103, %s105
    %p112 = scmp.eq.s32.totalorder %s20, 1
    %p113 = por %p111, %p112
    %p114 = scmp.ne.s32.totalorder %s105, %s106
    %p115 = scmp.eq.s32.totalorder %s20, 0
    %p116 = por %p114, %p115
    %p117 = scmp.ne.s32.totalorder %s105, %s106
    %p118 = scmp.eq.s32.totalorder %s21, 1
    %p119 = por %p117, %p118
    %p121 = scmp.ne.s32.totalorder %s106, %s120
    %p122 = scmp.eq.s32.totalorder %s21, 0
    %p123 = por %p121, %p122
    %s125 = sadd.s32 %s124, 1
    %p128 = scmp.eq.s32.totalorder %s15, 1
    %p129 = scmp.ne.s32.totalorder %s124, %s126
    %p130 = scmp.eq.s32.totalorder %s15, 0
    %p131 = por %p129, %p130
    %p132 = scmp.ne.s32.totalorder %s124, %s126
    %p133 = scmp.eq.s32.totalorder %s20, 1
    %p134 = por %p132, %p133
    %p135 = scmp.ne.s32.totalorder %s126, %s127
    %p136 = scmp.eq.s32.totalorder %s20, 0
    %p137 = por %p135, %p136
    %p138 = scmp.ne.s32.totalorder %s126, %s127
    %p139 = scmp.eq.s32.totalorder %s21, 1
    %p140 = por %p138, %p139
    %p142 = scmp.ne.s32.totalorder %s127, %s141
    %p143 = scmp.eq.s32.totalorder %s21, 0
    %p144 = por %p142, %p143
    %s146 = sadd.s32 %s145, 1
    %p149 = scmp.eq.s32.totalorder %s15, 1
    %p150 = scmp.ne.s32.totalorder %s145, %s147
    %p151 = scmp.eq.s32.totalorder %s15, 0
    %p152 = por %p150, %p151
    %p153 = scmp.ne.s32.totalorder %s145, %s147
    %p154 = scmp.eq.s32.totalorder %s20, 1
    %p155 = por %p153, %p154
    %p156 = scmp.ne.s32.totalorder %s147, %s148
    %p157 = scmp.eq.s32.totalorder %s20, 0
    %p158 = por %p156, %p157
    %p159 = scmp.ne.s32.totalorder %s147, %s148
    %p160 = scmp.eq.s32.totalorder %s21, 1
    %p161 = por %p159, %p160
    %p163 = scmp.ne.s32.totalorder %s148, %s162
    %p164 = scmp.eq.s32.totalorder %s21, 0
    %p165 = por %p163, %p164
    %s167 = sadd.s32 %s166, 1
    %p170 = scmp.eq.s32.totalorder %s15, 1
    %p171 = scmp.ne.s32.totalorder %s166, %s168
    %p172 = scmp.eq.s32.totalorder %s15, 0
    %p173 = por %p171, %p172
    %p174 = scmp.ne.s32.totalorder %s166, %s168
    %p175 = scmp.eq.s32.totalorder %s20, 1
    %p176 = por %p174, %p175
    %p177 = scmp.ne.s32.totalorder %s168, %s169
    %p178 = scmp.eq.s32.totalorder %s20, 0
    %p179 = por %p177, %p178
    %p180 = scmp.ne.s32.totalorder %s168, %s169
    %p181 = scmp.eq.s32.totalorder %s21, 1
    %p182 = por %p180, %p181
    %p184 = scmp.ne.s32.totalorder %s169, %s183
    %p185 = scmp.eq.s32.totalorder %s21, 0
    %p186 = por %p184, %p185
    %s188 = sadd.s32 %s187, 1
    %p191 = scmp.eq.s32.totalorder %s15, 1
    %p192 = scmp.ne.s32.totalorder %s187, %s189
    %p193 = scmp.eq.s32.totalorder %s15, 0
    %p194 = por %p192, %p193
    %p195 = scmp.ne.s32.totalorder %s187, %s189
    %p196 = scmp.eq.s32.totalorder %s20, 1
    %p197 = por %p195, %p196
    %p198 = scmp.ne.s32.totalorder %s189, %s190
    %p199 = scmp.eq.s32.totalorder %s20, 0
    %p200 = por %p198, %p199
    %p201 = scmp.ne.s32.totalorder %s189, %s190
    %p202 = scmp.eq.s32.totalorder %s21, 1
    %p203 = por %p201, %p202
    %p205 = scmp.ne.s32.totalorder %s190, %s204
    %p206 = scmp.eq.s32.totalorder %s21, 0
    %p207 = por %p205, %p206
    %s209 = sadd.s32 %s208, 1
    %p212 = scmp.eq.s32.totalorder %s15, 1
    %p213 = scmp.ne.s32.totalorder %s208, %s210
    %p214 = scmp.eq.s32.totalorder %s15, 0
    %p215 = por %p213, %p214
    %p216 = scmp.ne.s32.totalorder %s208, %s210
    %p217 = scmp.eq.s32.totalorder %s20, 1
    %p218 = por %p216, %p217
    %p219 = scmp.ne.s32.totalorder %s210, %s211
    %p220 = scmp.eq.s32.totalorder %s20, 0
    %p221 = por %p219, %p220
    %p222 = scmp.ne.s32.totalorder %s210, %s211
    %p223 = scmp.eq.s32.totalorder %s21, 1
    %p224 = por %p222, %p223
    %p226 = scmp.ne.s32.totalorder %s211, %s225
    %p227 = scmp.eq.s32.totalorder %s21, 0
    %p228 = por %p226, %p227
    %s229 = ssub.s32 %s22, %s34
    %s230 = ssub.s32 %s23, %s30
    %s231 = sor.u32 %s229, %s230
    %p232 = scmp.eq.s32.totalorder %s231, 0
    %s234 = sadd.s32 %s233, 1
    %s235 = scalar_select %p232, %s233, %s234
    %p238 = pneg %p232
    %p239 = scmp.eq.s32.totalorder %s15, 1
    %p240 = por %p238, %p239
    %p241 = scmp.ne.s32.totalorder %s233, %s236
    %p242 = scmp.eq.s32.totalorder %s15, 0
    %p243 = por %p241, %p242
    %p244 = scmp.ne.s32.totalorder %s233, %s236
    %p245 = scmp.eq.s32.totalorder %s20, 1
    %p246 = por %p244, %p245
    %p247 = scmp.ne.s32.totalorder %s236, %s237
    %p248 = scmp.eq.s32.totalorder %s20, 0
    %p249 = por %p247, %p248
    %p250 = scmp.ne.s32.totalorder %s236, %s237
    %p251 = scmp.eq.s32.totalorder %s21, 1
    %p252 = por %p250, %p251
    %p254 = scmp.ne.s32.totalorder %s237, %s253
    %p255 = scmp.eq.s32.totalorder %s21, 0
    %p256 = por %p254, %p255
    %p257 = scmp.le.s32.totalorder 1, %s15
    %p258 = scmp.lt.s32.totalorder %s15, 3
    %p259 = pnand %p257, %p258
    %p260 = pneg %p259
    // Predicated region
    $region9: #{residual_conv_block_forward.1} parent=5 // pred_check
      _
    $region10: #{residual_conv_block_forward.1} parent=5 // pred_check_branch
      %262 = sbr.rel (%p259) target = $region12
    $region11: #{residual_conv_block_forward.1} parent=5 // pred_region
      %s263 = ssub.s32 %s15, 1
      // Predicated region
      $region13: #{residual_conv_block_forward.1} parent=11 // pred_check
        %p264 = pneg %p74
      $region14: #{residual_conv_block_forward.1} parent=11 // pred_check_branch
        %266 = sbr.rel (%p264) target = $region16
      $region15: #{residual_conv_block_forward.1} parent=11 // pred_region
        _
      $region16: #{residual_conv_block_forward.1} parent=11 // pred_fallthru
        _
      // Predicated region
      $region17: #{residual_conv_block_forward.1} parent=11 // pred_check
        %p267 = pneg %p95
      $region18: #{residual_conv_block_forward.1} parent=11 // pred_check_branch
        %269 = sbr.rel (%p267) target = $region20
      $region19: #{residual_conv_block_forward.1} parent=11 // pred_region
        _
      $region20: #{residual_conv_block_forward.1} parent=11 // pred_fallthru
        _
      // Predicated region
      $region21: #{residual_conv_block_forward.1} parent=11 // pred_check
        %p270 = pneg %p116
      $region22: #{residual_conv_block_forward.1} parent=11 // pred_check_branch
        %272 = sbr.rel (%p270) target = $region24
      $region23: #{residual_conv_block_forward.1} parent=11 // pred_region
        _
      $region24: #{residual_conv_block_forward.1} parent=11 // pred_fallthru
        _
      // Predicated region
      $region25: #{residual_conv_block_forward.1} parent=11 // pred_check
        %p273 = pneg %p137
      $region26: #{residual_conv_block_forward.1} parent=11 // pred_check_branch
        %275 = sbr.rel (%p273) target = $region28
      $region27: #{residual_conv_block_forward.1} parent=11 // pred_region
        _
      $region28: #{residual_conv_block_forward.1} parent=11 // pred_fallthru
        _
      // Predicated region
      $region29: #{residual_conv_block_forward.1} parent=11 // pred_check
        %p276 = pneg %p158
      $region30: #{residual_conv_block_forward.1} parent=11 // pred_check_branch
        %278 = sbr.rel (%p276) target = $region32
      $region31: #{residual_conv_block_forward.1} parent=11 // pred_region
        _
      $region32: #{residual_conv_block_forward.1} parent=11 // pred_fallthru
        _
      // Predicated region
      $region33: #{residual_conv_block_forward.1} parent=11 // pred_check
        %p279 = pneg %p179
      $region34: #{residual_conv_block_forward.1} parent=11 // pred_check_branch
        %281 = sbr.rel (%p279) target = $region36
      $region35: #{residual_conv_block_forward.1} parent=11 // pred_region
        _
      $region36: #{residual_conv_block_forward.1} parent=11 // pred_fallthru
        _
      // Predicated region
      $region37: #{residual_conv_block_forward.1} parent=11 // pred_check
        %p282 = pneg %p200
      $region38: #{residual_conv_block_forward.1} parent=11 // pred_check_branch
        %284 = sbr.rel (%p282) target = $region40
      $region39: #{residual_conv_block_forward.1} parent=11 // pred_region
        _
      $region40: #{residual_conv_block_forward.1} parent=11 // pred_fallthru
        _
      // Predicated region
      $region41: #{residual_conv_block_forward.1} parent=11 // pred_check
        %p285 = pneg %p221
      $region42: #{residual_conv_block_forward.1} parent=11 // pred_check_branch
        %287 = sbr.rel (%p285) target = $region44
      $region43: #{residual_conv_block_forward.1} parent=11 // pred_region
        _
      $region44: #{residual_conv_block_forward.1} parent=11 // pred_fallthru
        _
    $region12: #{residual_conv_block_forward.1} parent=5 // pred_fallthru
      _
    %p288 = scmp.lt.s32.totalorder %s15, 2
    // Predicated region
    $region45: #{residual_conv_block_forward.1} parent=5 // pred_check
      %p289 = pneg %p288
    $region46: #{residual_conv_block_forward.1} parent=5 // pred_check_branch
      %291 = sbr.rel (%p289) target = $region48
    $region47: #{residual_conv_block_forward.1} parent=5 // pred_region
      // Predicated region
      $region49: #{residual_conv_block_forward.1} parent=47 // pred_check
        %p292 = pneg %p47
      $region50: #{residual_conv_block_forward.1} parent=47 // pred_check_branch
        %294 = sbr.rel (%p292) target = $region52
      $region51: #{residual_conv_block_forward.1} parent=47 // pred_region
        %p295 = scmp.lt.s32.totalorder %s22, 1
        %s296 = scalar_select %p295, %s22, 1
        %s297 = smul.addr %s296, 8
        %s298 = smul.addr %s297, 8
        %s299 = scalar_lea.vmem %s0, %s298
      $region52: #{residual_conv_block_forward.1} parent=47 // pred_fallthru
        _
    $region48: #{residual_conv_block_forward.1} parent=5 // pred_fallthru
      _
    %p300 = scmp.le.s32.totalorder 1, %s15
    %p301 = scmp.lt.s32.totalorder %s15, 3
    %p302 = pnand %p300, %p301
    %p303 = pneg %p302
    // Predicated region
    $region53: #{residual_conv_block_forward.1} parent=5 // pred_check
      _
    $region54: #{residual_conv_block_forward.1} parent=5 // pred_check_branch
      %305 = sbr.rel (%p302) target = $region56
    $region55: #{residual_conv_block_forward.1} parent=5 // pred_region
      %s306 = ssub.s32 %s15, 1
      %p307 = scmp.lt.s32.totalorder %s24, 1
      %s308 = scalar_select %p307, %s24, 1
      %s309 = smul.addr %s308, 8
      %s310 = smul.addr %s309, 8
      %s311 = scalar_lea.vmem %s0, %s310
      %p312 = pneg %p53
      %p313 = pneg %p50
      %p314 = pneg %p74
      %p315 = pneg %p71
      %p316 = pneg %p95
      %p317 = pneg %p92
      %p318 = pneg %p116
      %p319 = pneg %p113
      %p320 = pneg %p137
      %p321 = pneg %p134
      %p322 = pneg %p158
      %p323 = pneg %p155
      %p324 = pneg %p179
      %p325 = pneg %p176
      %p326 = pneg %p200
      %p327 = pneg %p197
      %p328 = pneg %p221
      %p329 = pneg %p218
      %p330 = pneg %p249
      %p331 = pneg %p246
      %s332 = smul.u32 2, %s25
      %p333 = scmp.lt.s32.totalorder %s24, 1
      %s334 = scalar_select %p333, %s24, 1
      %p335 = scmp.lt.s32.totalorder %s332, 1
      %s336 = scalar_select %p335, %s332, 1
      %s337 = smul.addr %s334, 2
      %s338 = sadd.s32 %s336, %s337
      %s339 = smul.addr %s338, 8
      %s340 = scalar_lea.vmem %s9, %s339
      %p341 = scmp.lt.s32.totalorder %s24, 1
      %s342 = scalar_select %p341, %s24, 1
      %s343 = smul.addr %s342, 8
      %s344 = smul.addr %s343, 8
      %s345 = scalar_lea.vmem %s0, %s344
      %s346 = smul.u32 2, %s25
      %p347 = scmp.lt.s32.totalorder %s24, 1
      %s348 = scalar_select %p347, %s24, 1
      %p349 = scmp.lt.s32.totalorder %s346, 1
      %s350 = scalar_select %p349, %s346, 1
      %s351 = smul.addr %s348, 2
      %s352 = sadd.s32 %s350, %s351
      %s353 = smul.addr %s352, 8
      %s354 = scalar_lea.vmem %s9, %s353
      %s355 = smul.u32 2, %s25
      %s357 = smul.u32 %s25, 16
      %s358 = scalar_lea.vmem %s345, %s357
      %v359 = vld [vmem:[%s358] sm:$0xff]
      %v360 = vld [vmem:[%s358 + $0x8] sm:$0xff]
      %v361 = vld [vmem:[%s358 + $0x10] sm:$0xff]
      %v362 = vld [vmem:[%s358 + $0x18] sm:$0xff]
      %v363 = vld [vmem:[%s358 + $0x20] sm:$0xff]
      %v364 = vld [vmem:[%s358 + $0x28] sm:$0xff]
      %v365 = vld [vmem:[%s358 + $0x30] sm:$0xff]
      %v366 = vld [vmem:[%s358 + $0x38] sm:$0xff]
      %s367 = ssub.s32 %s357, 24
      %v368 = vlaneseq
      %v369 = vshrl.u32 %v368, 7
      %v370 = vadd.s32 %v369, 8
      %v371 = vadd.s32 %v369, 16
      %v372 = vadd.s32 %v369, 24
      %v373 = vadd.s32 %v369, 32
      %v374 = vadd.s32 %v369, 40
      %v375 = vadd.s32 %v369, 48
      %v376 = vadd.s32 %v369, 56
      %v377 = vstv %s367
      %v378 = vadd.s32 %v377, %v369
      %v379 = vadd.s32 %v377, %v370
      %v380 = vadd.s32 %v377, %v371
      %v381 = vadd.s32 %v377, %v372
      %v382 = vadd.s32 %v377, %v373
      %v383 = vadd.s32 %v377, %v374
      %v384 = vadd.s32 %v377, %v375
      %v385 = vadd.s32 %v377, %v376
      %vm386 = vcmp.ge.s32.totalorder %v378, 0
      %vm387 = vcmp.ge.s32.totalorder %v379, 0
      %vm388 = vcmp.ge.s32.totalorder %v380, 0
      %vm389 = vcmp.ge.s32.totalorder %v381, 0
      %vm390 = vcmp.ge.s32.totalorder %v382, 0
      %vm391 = vcmp.ge.s32.totalorder %v383, 0
      %vm392 = vcmp.ge.s32.totalorder %v384, 0
      %vm393 = vcmp.ge.s32.totalorder %v385, 0
      %vm394 = vcmp.lt.s32.totalorder %v378, 16
      %vm395 = vcmp.lt.s32.totalorder %v379, 16
      %vm396 = vcmp.lt.s32.totalorder %v380, 16
      %vm397 = vcmp.lt.s32.totalorder %v381, 16
      %vm398 = vcmp.lt.s32.totalorder %v382, 16
      %vm399 = vcmp.lt.s32.totalorder %v383, 16
      %vm400 = vcmp.lt.s32.totalorder %v384, 16
      %vm401 = vcmp.lt.s32.totalorder %v385, 16
      %vm402 = vmand %vm386, %vm394
      %vm403 = vmand %vm387, %vm395
      %vm404 = vmand %vm388, %vm396
      %vm405 = vmand %vm389, %vm397
      %vm406 = vmand %vm390, %vm398
      %vm407 = vmand %vm391, %vm399
      %vm408 = vmand %vm392, %vm400
      %vm409 = vmand %vm393, %vm401
      %v410 = vsel %vm402, 1, 0
      %v411 = vsel %vm403, 1, 0
      %v412 = vsel %vm404, 1, 0
      %v413 = vsel %vm405, 1, 0
      %v414 = vsel %vm406, 1, 0
      %v415 = vsel %vm407, 1, 0
      %v416 = vsel %vm408, 1, 0
      %v417 = vsel %vm409, 1, 0
      %v418 = vcvt.s32.f32 %v410
      %v419 = vcvt.s32.f32 %v411
      %v420 = vcvt.s32.f32 %v412
      %v421 = vcvt.s32.f32 %v413
      %v422 = vcvt.s32.f32 %v414
      %v423 = vcvt.s32.f32 %v415
      %v424 = vcvt.s32.f32 %v416
      %v425 = vcvt.s32.f32 %v417
      %v426 = vld [vmem:[%s1] sm:$0xf]
      %v427 = vld [vmem:[%s1 + $0x4] sm:$0xf]
      %v428 = vld [vmem:[%s1 + $0x8] sm:$0x3]
      %v429 = vld [vmem:[%s2] sm:$0x1]
      %v430 = vmul.f32 %v359, %v418
      %v431 = vmul.f32 %v360, %v419
      %v432 = vmul.f32 %v361, %v420
      %v433 = vmul.f32 %v362, %v421
      %v434 = vmul.f32 %v363, %v422
      %v435 = vmul.f32 %v364, %v423
      %v436 = vmul.f32 %v365, %v424
      %v437 = vmul.f32 %v366, %v425
      %v438 = vrot.slane %v430, 6
      %v439 = vrot.slane %v431, 6
      %v440 = vrot.slane %v432, 6
      %v441 = vrot.slane %v433, 6
      %v442 = vrot.slane %v434, 6
      %v443 = vrot.slane %v435, 6
      %v444 = vrot.slane %v436, 6
      %v445 = vrot.slane %v437, 6
      %vm446 = vcmp.lt.s32.totalorder %v369, 2
      %v447 = vsel %vm446, %v444, %v445
      %v448 = vsel %vm446, %v443, %v444
      %v449 = vsel %vm446, %v442, %v443
      %v450 = vsel %vm446, %v441, %v442
      %v451 = vsel %vm446, %v440, %v441
      %v452 = vsel %vm446, %v439, %v440
      %v453 = vsel %vm446, %v438, %v439
      %v454 = vsel %vm446, %v445, %v438
      %v455 = vrot.slane %v430, 7
      %v456 = vrot.slane %v431, 7
      %v457 = vrot.slane %v432, 7
      %v458 = vrot.slane %v433, 7
      %v459 = vrot.slane %v434, 7
      %v460 = vrot.slane %v435, 7
      %v461 = vrot.slane %v436, 7
      %v462 = vrot.slane %v437, 7
      %vm463 = vcmp.lt.s32.totalorder %v369, 1
      %v464 = vsel %vm463, %v461, %v462
      %v465 = vsel %vm463, %v460, %v461
      %v466 = vsel %vm463, %v459, %v460
      %v467 = vsel %vm463, %v458, %v459
      %v468 = vsel %vm463, %v457, %v458
      %v469 = vsel %vm463, %v456, %v457
      %v470 = vsel %vm463, %v455, %v456
      %v471 = vsel %vm463, %v462, %v455
      %v472 = vrot.slane %v430, 1
      %v473 = vrot.slane %v431, 1
      %v474 = vrot.slane %v432, 1
      %v475 = vrot.slane %v433, 1
      %v476 = vrot.slane %v434, 1
      %v477 = vrot.slane %v435, 1
      %v478 = vrot.slane %v436, 1
      %v479 = vrot.slane %v437, 1
      %vm480 = vcmp.lt.s32.totalorder %v369, 7
      %v481 = vsel %vm480, %v478, %v479
      %v482 = vsel %vm480, %v477, %v478
      %v483 = vsel %vm480, %v476, %v477
      %v484 = vsel %vm480, %v475, %v476
      %v485 = vsel %vm480, %v474, %v475
      %v486 = vsel %vm480, %v473, %v474
      %v487 = vsel %vm480, %v472, %v473
      %v488 = vsel %vm480, %v479, %v472
      %v489 = vrot.slane %v430, 2
      %v490 = vrot.slane %v431, 2
      %v491 = vrot.slane %v432, 2
      %v492 = vrot.slane %v433, 2
      %v493 = vrot.slane %v434, 2
      %v494 = vrot.slane %v435, 2
      %v495 = vrot.slane %v436, 2
      %v496 = vrot.slane %v437, 2
      %vm497 = vcmp.lt.s32.totalorder %v369, 6
      %v498 = vsel %vm497, %v495, %v496
      %v499 = vsel %vm497, %v494, %v495
      %v500 = vsel %vm497, %v493, %v494
      %v501 = vsel %vm497, %v492, %v493
      %v502 = vsel %vm497, %v491, %v492
      %v503 = vsel %vm497, %v490, %v491
      %v504 = vsel %vm497, %v489, %v490
      %v505 = vsel %vm497, %v496, %v489
      %514 = vrot.lane.b32.xlu0 %v471, 4
      %v515 = vpop.permute.xlu0 %514
      %516 = vrot.lane.b32.xlu0 %v470, 4
      %v517 = vpop.permute.xlu0 %516
      %518 = vrot.lane.b32.xlu0 %v469, 4
      %v519 = vpop.permute.xlu0 %518
      %520 = vrot.lane.b32.xlu0 %v468, 4
      %v521 = vpop.permute.xlu0 %520
      %522 = vrot.lane.b32.xlu0 %v467, 4
      %v523 = vpop.permute.xlu0 %522
      %524 = vrot.lane.b32.xlu0 %v466, 4
      %v525 = vpop.permute.xlu0 %524
      %526 = vrot.lane.b32.xlu0 %v465, 4
      %v527 = vpop.permute.xlu0 %526
      %528 = vrot.lane.b32.xlu0 %v464, 4
      %v529 = vpop.permute.xlu0 %528
      %546 = vrot.lane.b32.xlu0 %v430, 8
      %v547 = vpop.permute.xlu0 %546
      %548 = vrot.lane.b32.xlu0 %v431, 8
      %v549 = vpop.permute.xlu0 %548
      %550 = vrot.lane.b32.xlu0 %v432, 8
      %v551 = vpop.permute.xlu0 %550
      %552 = vrot.lane.b32.xlu0 %v433, 8
      %v553 = vpop.permute.xlu0 %552
      %554 = vrot.lane.b32.xlu0 %v434, 8
      %v555 = vpop.permute.xlu0 %554
      %556 = vrot.lane.b32.xlu0 %v435, 8
      %v557 = vpop.permute.xlu0 %556
      %558 = vrot.lane.b32.xlu0 %v436, 8
      %v559 = vpop.permute.xlu0 %558
      %560 = vrot.lane.b32.xlu0 %v437, 8
      %v561 = vpop.permute.xlu0 %560
      %578 = vrot.lane.b32.xlu0 %v487, 12
      %v579 = vpop.permute.xlu0 %578
      %580 = vrot.lane.b32.xlu0 %v486, 12
      %v581 = vpop.permute.xlu0 %580
      %582 = vrot.lane.b32.xlu0 %v485, 12
      %v583 = vpop.permute.xlu0 %582
      %584 = vrot.lane.b32.xlu0 %v484, 12
      %v585 = vpop.permute.xlu0 %584
      %586 = vrot.lane.b32.xlu0 %v483, 12
      %v587 = vpop.permute.xlu0 %586
      %588 = vrot.lane.b32.xlu0 %v482, 12
      %v589 = vpop.permute.xlu0 %588
      %590 = vrot.lane.b32.xlu0 %v481, 12
      %v591 = vpop.permute.xlu0 %590
      %592 = vrot.lane.b32.xlu0 %v488, 12
      %v593 = vpop.permute.xlu0 %592
      %610 = vrot.lane.b32.xlu0 %v504, 16
      %v611 = vpop.permute.xlu0 %610
      %612 = vrot.lane.b32.xlu0 %v503, 16
      %v613 = vpop.permute.xlu0 %612
      %614 = vrot.lane.b32.xlu0 %v502, 16
      %v615 = vpop.permute.xlu0 %614
      %616 = vrot.lane.b32.xlu0 %v501, 16
      %v617 = vpop.permute.xlu0 %616
      %618 = vrot.lane.b32.xlu0 %v500, 16
      %v619 = vpop.permute.xlu0 %618
      %620 = vrot.lane.b32.xlu0 %v499, 16
      %v621 = vpop.permute.xlu0 %620
      %622 = vrot.lane.b32.xlu0 %v498, 16
      %v623 = vpop.permute.xlu0 %622
      %624 = vrot.lane.b32.xlu0 %v505, 16
      %v625 = vpop.permute.xlu0 %624
      %vm634 = vcmask 31744
      %v635 = vsel %vm634, %v454, %v515
      %v636 = vsel %vm634, %v453, %v517
      %v637 = vsel %vm634, %v452, %v519
      %v638 = vsel %vm634, %v451, %v521
      %v639 = vsel %vm634, %v450, %v523
      %v640 = vsel %vm634, %v449, %v525
      %v641 = vsel %vm634, %v448, %v527
      %v642 = vsel %vm634, %v447, %v529
      %vm643 = vcmask 64512
      %v644 = vsel %vm643, %v635, %v547
      %v645 = vsel %vm643, %v636, %v549
      %v646 = vsel %vm643, %v637, %v551
      %v647 = vsel %vm643, %v638, %v553
      %v648 = vsel %vm643, %v639, %v555
      %v649 = vsel %vm643, %v640, %v557
      %v650 = vsel %vm643, %v641, %v559
      %v651 = vsel %vm643, %v642, %v561
      %vm652 = vcmask 97280
      %v653 = vsel %vm652, %v644, %v579
      %v654 = vsel %vm652, %v645, %v581
      %v655 = vsel %vm652, %v646, %v583
      %v656 = vsel %vm652, %v647, %v585
      %v657 = vsel %vm652, %v648, %v587
      %v658 = vsel %vm652, %v649, %v589
      %v659 = vsel %vm652, %v650, %v591
      %v660 = vsel %vm652, %v651, %v593
      %vm661 = vcmask 130048
      %v662 = vsel %vm661, %v653, %v611
      %v663 = vsel %vm661, %v654, %v613
      %v664 = vsel %vm661, %v655, %v615
      %v665 = vsel %vm661, %v656, %v617
      %v666 = vsel %vm661, %v657, %v619
      %v667 = vsel %vm661, %v658, %v621
      %v668 = vsel %vm661, %v659, %v623
      %v669 = vsel %vm661, %v660, %v625
      %v670 = vpack.c.bf16 %v663, %v662
      %v671 = vpack.c.bf16 %v665, %v664
      %v672 = vpack.c.bf16 %v667, %v666
      %v673 = vpack.c.bf16 %v669, %v668
      %v675 = vlaneseq
      %v676 = vshrl.u32 %v675, 7
      %v677 = vsub.s32 0, %v676
      %v678 = vrot.slane %v429, %v677
      %v683 = vunpack.c.l.b16 %v426
      %v684 = vunpack.c.l.b16 %v427
      %v685 = vunpack.c.l.b16 %v428
      %v686 = vpack.c.b16 %v684, %v683
      %v687 = vpack.c.b16 %v685, %v685
      %vm689 = vcmask 162816
      %v691 = vsel %vm689, %v670, 0
      %v694 = vsel %vm689, %v671, 0
      %v697 = vsel %vm689, %v672, 0
      %v700 = vsel %vm689, %v673, 0
      %vm702 = vcmask 1041408
      %v704 = vsel %vm702, %v687, 0
      %706 = vmatprep.subr.bf16.mxu0 0
      %707 = vmatpush1.bf16.msra.mxu0 %v686
      %708 = vmatprep.subr.bf16.mxu0 0
      %709 = vmatpush1.bf16.msra.mxu0 %v704
      %710 = vmatprep.subr.bf16.mxu0 0
      %711 = vmatpush1.bf16.msra.mxu0 0
      %712 = vmatprep.subr.bf16.mxu0 0
      %713 = vmatpush1.bf16.msra.mxu0 0
      %714 = vmatprep.subr.bf16.mxu0 0
      %715 = vmatpush1.bf16.msra.mxu0 0
      %716 = vmatprep.subr.bf16.mxu0 0
      %717 = vmatpush1.bf16.msra.mxu0 0
      %718 = vmatprep.subr.bf16.mxu0 0
      %719 = vmatpush1.bf16.msra.mxu0 0
      %720 = vmatprep.subr.bf16.mxu0 0
      %721 = vmatpush1.bf16.msra.mxu0 0
      %722 = vmatprep.subr.bf16.mxu0 0
      %723 = vmatpush1.bf16.msra.mxu0 0
      %724 = vmatprep.subr.bf16.mxu0 0
      %725 = vmatpush1.bf16.msra.mxu0 0
      %726 = vmatprep.subr.bf16.mxu0 0
      %727 = vmatpush1.bf16.msra.mxu0 0
      %728 = vmatprep.subr.bf16.mxu0 0
      %729 = vmatpush1.bf16.msra.mxu0 0
      %730 = vmatprep.subr.bf16.mxu0 0
      %731 = vmatpush1.bf16.msra.mxu0 0
      %732 = vmatprep.subr.bf16.mxu0 0
      %733 = vmatpush1.bf16.msra.mxu0 0
      %734 = vmatprep.subr.bf16.mxu0 0
      %735 = vmatpush1.bf16.msra.mxu0 0
      %736 = vmatprep.subr.bf16.mxu0 0
      %737 = vmatpush1.bf16.msra.mxu0 0
      %738 = vmatprep.mubr.bf16.mxu0 0
      %739 = vmatmul.mubr.bf16.gmra.mrb[0].mxu0 %v691
      %v740 = vpop.f32.mrb[0].mxu0
      %v741 = vadd.f32 %v678, %v740
      %v742 = vpop.f32.mrb[0].mxu0
      %v743 = vpop.f32.mrb[0].mxu0
      %v744 = vadd.f32 %v678, %v743
      %v745 = vpop.f32.mrb[0].mxu0
      %746 = vmatprep.mubr.bf16.mxu0 0
      %747 = vmatmul.mubr.bf16.gmra.mrb[0].mxu0 %v694
      %v748 = vpop.f32.mrb[0].mxu0
      %v749 = vadd.f32 %v678, %v748
      %v750 = vpop.f32.mrb[0].mxu0
      %v751 = vpop.f32.mrb[0].mxu0
      %v752 = vadd.f32 %v678, %v751
      %v753 = vpop.f32.mrb[0].mxu0
      %754 = vmatprep.mubr.bf16.mxu0 0
      %755 = vmatmul.mubr.bf16.gmra.mrb[0].mxu0 %v697
      %v756 = vpop.f32.mrb[0].mxu0
      %v757 = vadd.f32 %v678, %v756
      %v758 = vpop.f32.mrb[0].mxu0
      %v759 = vpop.f32.mrb[0].mxu0
      %v760 = vadd.f32 %v678, %v759
      %v761 = vpop.f32.mrb[0].mxu0
      %762 = vmatprep.mubr.bf16.mxu0 0
      %763 = vmatmul.mubr.bf16.gmra.mrb[0].mxu0 %v700
      %v764 = vpop.f32.mrb[0].mxu0
      %v765 = vadd.f32 %v678, %v764
      %v766 = vpop.f32.mrb[0].mxu0
      %v767 = vpop.f32.mrb[0].mxu0
      %v768 = vadd.f32 %v678, %v767
      %v769 = vpop.f32.mrb[0].mxu0
      %770 = vdwg.mxu0
      loop: start=0, step=1, limit=4
      $region57: #{residual_conv_block_forward.1} parent=55 // loop_pre_header
        _
      $region58: #{residual_conv_block_forward.1} parent=55 // loop_header
        %s772 = sphi 0, %s776
        %p773 = scmp.ge.s32.totalorder %s772, 4
        %v777 = vphi %v741, %v2231
        %v778 = vphi %v744, %v2232
        %v779 = vphi %v749, %v2233
        %v780 = vphi %v752, %v2234
        %v781 = vphi %v757, %v2235
        %v782 = vphi %v760, %v2236
        %v783 = vphi %v765, %v2237
        %v784 = vphi %v768, %v2238
      $region59: #{residual_conv_block_forward.1} parent=55 // loop_header_branch
        %775 = sbr.rel (%p773) target = $region63
      $region60: #{residual_conv_block_forward.1} parent=55 // loop_body
        %s785 = smul.u32 %s772, 2
        %s786 = smul.u32 %s785, 20
        %s787 = smul.addr %s786, 4
        %s788 = scalar_lea.vmem %s3, %s787
        %v789 = vld [vmem:[%s788] sm:$0xf]
        %v790 = vld [vmem:[%s788 + $0x4] sm:$0xf]
        %v791 = vld [vmem:[%s788 + $0x8] sm:$0xf]
        %v792 = vld [vmem:[%s788 + $0xc] sm:$0xf]
        %v793 = vld [vmem:[%s788 + $0x10] sm:$0xf]
        %v794 = vld [vmem:[%s788 + $0x14] sm:$0xf]
        %v795 = vld [vmem:[%s788 + $0x18] sm:$0xf]
        %v796 = vld [vmem:[%s788 + $0x1c] sm:$0xf]
        %v797 = vld [vmem:[%s788 + $0x20] sm:$0xf]
        %v798 = vld [vmem:[%s788 + $0x24] sm:$0xf]
        %v799 = vld [vmem:[%s788 + $0x28] sm:$0xf]
        %v800 = vld [vmem:[%s788 + $0x2c] sm:$0xf]
        %v801 = vld [vmem:[%s788 + $0x30] sm:$0xf]
        %v802 = vld [vmem:[%s788 + $0x34] sm:$0xf]
        %v803 = vld [vmem:[%s788 + $0x38] sm:$0xf]
        %v804 = vld [vmem:[%s788 + $0x3c] sm:$0xf]
        %v805 = vld [vmem:[%s788 + $0x40] sm:$0xf]
        %v806 = vld [vmem:[%s788 + $0x44] sm:$0xf]
        %v807 = vld [vmem:[%s788 + $0x48] sm:$0xf]
        %v808 = vld [vmem:[%s788 + $0x4c] sm:$0xf]
        %s809 = scalar_lea.vmem %s4, %s785
        %v810 = vld [vmem:[%s809] sm:$0x1]
        %v811 = vmul.f32 %v777, %v418
        %v812 = vmul.f32 %v778, %v419
        %v813 = vmul.f32 %v779, %v420
        %v814 = vmul.f32 %v780, %v421
        %v815 = vmul.f32 %v781, %v422
        %v816 = vmul.f32 %v782, %v423
        %v817 = vmul.f32 %v783, %v424
        %v818 = vmul.f32 %v784, %v425
        %v819 = vrot.slane %v811, 6
        %v820 = vrot.slane %v812, 6
        %v821 = vrot.slane %v813, 6
        %v822 = vrot.slane %v814, 6
        %v823 = vrot.slane %v815, 6
        %v824 = vrot.slane %v816, 6
        %v825 = vrot.slane %v817, 6
        %v826 = vrot.slane %v818, 6
        %v827 = vsel %vm446, %v825, %v826
        %v828 = vsel %vm446, %v824, %v825
        %v829 = vsel %vm446, %v823, %v824
        %v830 = vsel %vm446, %v822, %v823
        %v831 = vsel %vm446, %v821, %v822
        %v832 = vsel %vm446, %v820, %v821
        %v833 = vsel %vm446, %v819, %v820
        %v834 = vsel %vm446, %v826, %v819
        %v835 = vrot.slane %v811, 7
        %v836 = vrot.slane %v812, 7
        %v837 = vrot.slane %v813, 7
        %v838 = vrot.slane %v814, 7
        %v839 = vrot.slane %v815, 7
        %v840 = vrot.slane %v816, 7
        %v841 = vrot.slane %v817, 7
        %v842 = vrot.slane %v818, 7
        %v843 = vsel %vm463, %v841, %v842
        %v844 = vsel %vm463, %v840, %v841
        %v845 = vsel %vm463, %v839, %v840
        %v846 = vsel %vm463, %v838, %v839
        %v847 = vsel %vm463, %v837, %v838
        %v848 = vsel %vm463, %v836, %v837
        %v849 = vsel %vm463, %v835, %v836
        %v850 = vsel %vm463, %v842, %v835
        %v851 = vrot.slane %v811, 1
        %v852 = vrot.slane %v812, 1
        %v853 = vrot.slane %v813, 1
        %v854 = vrot.slane %v814, 1
        %v855 = vrot.slane %v815, 1
        %v856 = vrot.slane %v816, 1
        %v857 = vrot.slane %v817, 1
        %v858 = vrot.slane %v818, 1
        %v859 = vsel %vm480, %v857, %v858
        %v860 = vsel %vm480, %v856, %v857
        %v861 = vsel %vm480, %v855, %v856
        %v862 = vsel %vm480, %v854, %v855
        %v863 = vsel %vm480, %v853, %v854
        %v864 = vsel %vm480, %v852, %v853
        %v865 = vsel %vm480, %v851, %v852
        %v866 = vsel %vm480, %v858, %v851
        %v867 = vrot.slane %v811, 2
        %v868 = vrot.slane %v812, 2
        %v869 = vrot.slane %v813, 2
        %v870 = vrot.slane %v814, 2
        %v871 = vrot.slane %v815, 2
        %v872 = vrot.slane %v816, 2
        %v873 = vrot.slane %v817, 2
        %v874 = vrot.slane %v818, 2
        %v875 = vsel %vm497, %v873, %v874
        %v876 = vsel %vm497, %v872, %v873
        %v877 = vsel %vm497, %v871, %v872
        %v878 = vsel %vm497, %v870, %v871
        %v879 = vsel %vm497, %v869, %v870
        %v880 = vsel %vm497, %v868, %v869
        %v881 = vsel %vm497, %v867, %v868
        %v882 = vsel %vm497, %v874, %v867
        %891 = vrot.lane.b32.xlu0 %v850, 32
        %v892 = vpop.permute.xlu0 %891
        %893 = vrot.lane.b32.xlu0 %v849, 32
        %v894 = vpop.permute.xlu0 %893
        %895 = vrot.lane.b32.xlu0 %v848, 32
        %v896 = vpop.permute.xlu0 %895
        %897 = vrot.lane.b32.xlu0 %v847, 32
        %v898 = vpop.permute.xlu0 %897
        %899 = vrot.lane.b32.xlu0 %v846, 32
        %v900 = vpop.permute.xlu0 %899
        %901 = vrot.lane.b32.xlu0 %v845, 32
        %v902 = vpop.permute.xlu0 %901
        %903 = vrot.lane.b32.xlu0 %v844, 32
        %v904 = vpop.permute.xlu0 %903
        %905 = vrot.lane.b32.xlu0 %v843, 32
        %v906 = vpop.permute.xlu0 %905
        %923 = vrot.lane.b32.xlu0 %v811, 64
        %v924 = vpop.permute.xlu0 %923
        %925 = vrot.lane.b32.xlu0 %v812, 64
        %v926 = vpop.permute.xlu0 %925
        %927 = vrot.lane.b32.xlu0 %v813, 64
        %v928 = vpop.permute.xlu0 %927
        %929 = vrot.lane.b32.xlu0 %v814, 64
        %v930 = vpop.permute.xlu0 %929
        %931 = vrot.lane.b32.xlu0 %v815, 64
        %v932 = vpop.permute.xlu0 %931
        %933 = vrot.lane.b32.xlu0 %v816, 64
        %v934 = vpop.permute.xlu0 %933
        %935 = vrot.lane.b32.xlu0 %v817, 64
        %v936 = vpop.permute.xlu0 %935
        %937 = vrot.lane.b32.xlu0 %v818, 64
        %v938 = vpop.permute.xlu0 %937
        %955 = vrot.lane.b32.xlu0 %v865, 96
        %v956 = vpop.permute.xlu0 %955
        %957 = vrot.lane.b32.xlu0 %v864, 96
        %v958 = vpop.permute.xlu0 %957
        %959 = vrot.lane.b32.xlu0 %v863, 96
        %v960 = vpop.permute.xlu0 %959
        %961 = vrot.lane.b32.xlu0 %v862, 96
        %v962 = vpop.permute.xlu0 %961
        %963 = vrot.lane.b32.xlu0 %v861, 96
        %v964 = vpop.permute.xlu0 %963
        %965 = vrot.lane.b32.xlu0 %v860, 96
        %v966 = vpop.permute.xlu0 %965
        %967 = vrot.lane.b32.xlu0 %v859, 96
        %v968 = vpop.permute.xlu0 %967
        %969 = vrot.lane.b32.xlu0 %v866, 96
        %v970 = vpop.permute.xlu0 %969
        %vm979 = vcmask 261120
        %v980 = vsel %vm979, %v834, %v892
        %v981 = vsel %vm979, %v833, %v894
        %v982 = vsel %vm979, %v832, %v896
        %v983 = vsel %vm979, %v831, %v898
        %v984 = vsel %vm979, %v830, %v900
        %v985 = vsel %vm979, %v829, %v902
        %v986 = vsel %vm979, %v828, %v904
        %v987 = vsel %vm979, %v827, %v906
        %vm988 = vcmask 523264
        %v989 = vsel %vm988, %v980, %v924
        %v990 = vsel %vm988, %v981, %v926
        %v991 = vsel %vm988, %v982, %v928
        %v992 = vsel %vm988, %v983, %v930
        %v993 = vsel %vm988, %v984, %v932
        %v994 = vsel %vm988, %v985, %v934
        %v995 = vsel %vm988, %v986, %v936
        %v996 = vsel %vm988, %v987, %v938
        %vm997 = vcmask 785408
        %v998 = vsel %vm997, %v989, %v956
        %v999 = vsel %vm997, %v990, %v958
        %v1000 = vsel %vm997, %v991, %v960
        %v1001 = vsel %vm997, %v992, %v962
        %v1002 = vsel %vm997, %v993, %v964
        %v1003 = vsel %vm997, %v994, %v966
        %v1004 = vsel %vm997, %v995, %v968
        %v1005 = vsel %vm997, %v996, %v970
        %v1006 = vpack.c.bf16 %v999, %v998
        %v1007 = vpack.c.bf16 %v880, %v881
        %v1008 = vpack.c.bf16 %v1001, %v1000
        %v1009 = vpack.c.bf16 %v878, %v879
        %v1010 = vpack.c.bf16 %v1003, %v1002
        %v1011 = vpack.c.bf16 %v876, %v877
        %v1012 = vpack.c.bf16 %v1005, %v1004
        %v1013 = vpack.c.bf16 %v882, %v875
        %v1015 = vlaneseq
        %v1016 = vshrl.u32 %v1015, 7
        %v1017 = vsub.s32 0, %v1016
        %v1018 = vrot.slane %v810, %v1017
        %v1040 = vunpack.c.l.b16 %v789
        %v1041 = vunpack.c.l.b16 %v790
        %v1042 = vunpack.c.l.b16 %v791
        %v1043 = vunpack.c.l.b16 %v792
        %v1044 = vunpack.c.l.b16 %v793
        %v1045 = vunpack.c.l.b16 %v794
        %v1046 = vunpack.c.l.b16 %v795
        %v1047 = vunpack.c.l.b16 %v796
        %v1048 = vunpack.c.l.b16 %v797
        %v1049 = vunpack.c.l.b16 %v798
        %v1050 = vunpack.c.l.b16 %v799
        %v1051 = vunpack.c.l.b16 %v800
        %v1052 = vunpack.c.l.b16 %v801
        %v1053 = vunpack.c.l.b16 %v802
        %v1054 = vunpack.c.l.b16 %v803
        %v1055 = vunpack.c.l.b16 %v804
        %v1056 = vunpack.c.l.b16 %v805
        %v1057 = vunpack.c.l.b16 %v806
        %v1058 = vunpack.c.l.b16 %v807
        %v1059 = vunpack.c.l.b16 %v808
        %v1060 = vpack.c.b16 %v1041, %v1040
        %v1061 = vpack.c.b16 %v1043, %v1042
        %v1062 = vpack.c.b16 %v1045, %v1044
        %v1063 = vpack.c.b16 %v1047, %v1046
        %v1064 = vpack.c.b16 %v1049, %v1048
        %v1065 = vpack.c.b16 %v1051, %v1050
        %v1066 = vpack.c.b16 %v1053, %v1052
        %v1067 = vpack.c.b16 %v1055, %v1054
        %v1068 = vpack.c.b16 %v1057, %v1056
        %v1069 = vpack.c.b16 %v1059, %v1058
        %v1081 = vsel %vm979, %v1007, 0
        %v1084 = vsel %vm979, %v1009, 0
        %v1087 = vsel %vm979, %v1011, 0
        %v1090 = vsel %vm979, %v1013, 0
        %1092 = vmatprep.subr.bf16.mxu0 0
        %1093 = vmatpush1.bf16.msra.mxu0 %v1060
        %1094 = vmatprep.subr.bf16.mxu0 0
        %1095 = vmatpush1.bf16.msra.mxu0 %v1061
        %1096 = vmatprep.subr.bf16.mxu0 0
        %1097 = vmatpush1.bf16.msra.mxu0 %v1062
        %1098 = vmatprep.subr.bf16.mxu0 0
        %1099 = vmatpush1.bf16.msra.mxu0 %v1063
        %1100 = vmatprep.subr.bf16.mxu0 0
        %1101 = vmatpush1.bf16.msra.mxu0 %v1064
        %1102 = vmatprep.subr.bf16.mxu0 0
        %1103 = vmatpush1.bf16.msra.mxu0 %v1065
        %1104 = vmatprep.subr.bf16.mxu0 0
        %1105 = vmatpush1.bf16.msra.mxu0 %v1066
        %1106 = vmatprep.subr.bf16.mxu0 0
        %1107 = vmatpush1.bf16.msra.mxu0 %v1067
        %1108 = vmatprep.subr.bf16.mxu0 0
        %1109 = vmatpush1.bf16.msra.mxu0 %v1068
        %1110 = vmatprep.subr.bf16.mxu0 0
        %1111 = vmatpush1.bf16.msra.mxu0 %v1069
        %1112 = vmatprep.subr.bf16.mxu0 0
        %1113 = vmatpush1.bf16.msra.mxu0 0
        %1114 = vmatprep.subr.bf16.mxu0 0
        %1115 = vmatpush1.bf16.msra.mxu0 0
        %1116 = vmatprep.subr.bf16.mxu0 0
        %1117 = vmatpush1.bf16.msra.mxu0 0
        %1118 = vmatprep.subr.bf16.mxu0 0
        %1119 = vmatpush1.bf16.msra.mxu0 0
        %1120 = vmatprep.subr.bf16.mxu0 0
        %1121 = vmatpush1.bf16.msra.mxu0 0
        %1122 = vmatprep.subr.bf16.mxu0 0
        %1123 = vmatpush1.bf16.msra.mxu0 0
        %1124 = vmatprep.mubr.bf16.mxu0 %v1081
        %1125 = vmatmul.mubr.bf16.gmra.mrb[0].mxu0 %v1006
        %v1126 = vpop.f32.mrb[0].mxu0
        %v1127 = vadd.f32 %v1018, %v1126
        %v1128 = vpop.f32.mrb[0].mxu0
        %v1129 = vpop.f32.mrb[0].mxu0
        %v1130 = vadd.f32 %v1018, %v1129
        %v1131 = vpop.f32.mrb[0].mxu0
        %1132 = vmatprep.mubr.bf16.mxu0 %v1084
        %1133 = vmatmul.mubr.bf16.gmra.mrb[0].mxu0 %v1008
        %v1134 = vpop.f32.mrb[0].mxu0
        %v1135 = vadd.f32 %v1018, %v1134
        %v1136 = vpop.f32.mrb[0].mxu0
        %v1137 = vpop.f32.mrb[0].mxu0
        %v1138 = vadd.f32 %v1018, %v1137
        %v1139 = vpop.f32.mrb[0].mxu0
        %1140 = vmatprep.mubr.bf16.mxu0 %v1087
        %1141 = vmatmul.mubr.bf16.gmra.mrb[0].mxu0 %v1010
        %v1142 = vpop.f32.mrb[0].mxu0
        %v1143 = vadd.f32 %v1018, %v1142
        %v1144 = vpop.f32.mrb[0].mxu0
        %v1145 = vpop.f32.mrb[0].mxu0
        %v1146 = vadd.f32 %v1018, %v1145
        %v1147 = vpop.f32.mrb[0].mxu0
        %1148 = vmatprep.mubr.bf16.mxu0 %v1090
        %1149 = vmatmul.mubr.bf16.gmra.mrb[0].mxu0 %v1012
        %v1150 = vpop.f32.mrb[0].mxu0
        %v1151 = vadd.f32 %v1018, %v1150
        %v1152 = vpop.f32.mrb[0].mxu0
        %v1153 = vpop.f32.mrb[0].mxu0
        %v1154 = vadd.f32 %v1018, %v1153
        %v1155 = vpop.f32.mrb[0].mxu0
        %1156 = vdwg.mxu0
        %s1157 = scalar_lea.vmem %s5, %s785
        %v1158 = vld [vmem:[%s1157] sm:$0x1]
        %s1159 = scalar_lea.vmem %s6, %s785
        %v1160 = vld [vmem:[%s1159] sm:$0x1]
        %v1161 = vsel %vm979, %v1127, 0.0
        %1162 = vadd.xlane.f32.xlu0 %v1161
        %v1163 = vpop.xlane.xlu0 %1162
        %v1164 = vsel %vm979, %v1130, 0.0
        %1165 = vadd.xlane.f32.xlu0 %v1164
        %v1166 = vpop.xlane.xlu0 %1165
        %v1167 = vsel %vm979, %v1135, 0.0
        %1168 = vadd.xlane.f32.xlu0 %v1167
        %v1169 = vpop.xlane.xlu0 %1168
        %v1170 = vsel %vm979, %v1138, 0.0
        %1171 = vadd.xlane.f32.xlu0 %v1170
        %v1172 = vpop.xlane.xlu0 %1171
        %v1173 = vsel %vm979, %v1143, 0.0
        %1174 = vadd.xlane.f32.xlu0 %v1173
        %v1175 = vpop.xlane.xlu0 %1174
        %v1176 = vsel %vm979, %v1146, 0.0
        %1177 = vadd.xlane.f32.xlu0 %v1176
        %v1178 = vpop.xlane.xlu0 %1177
        %v1179 = vsel %vm979, %v1151, 0.0
        %1180 = vadd.xlane.f32.xlu0 %v1179
        %v1181 = vpop.xlane.xlu0 %1180
        %v1182 = vsel %vm979, %v1154, 0.0
        %1183 = vadd.xlane.f32.xlu0 %v1182
        %v1184 = vpop.xlane.xlu0 %1183
        %v1185 = vrcp.pop 32.0
        %v1186 = vmul.f32 %v1163, %v1185
        %v1187 = vmul.f32 %v1166, %v1185
        %v1188 = vmul.f32 %v1169, %v1185
        %v1189 = vmul.f32 %v1172, %v1185
        %v1190 = vmul.f32 %v1175, %v1185
        %v1191 = vmul.f32 %v1178, %v1185
        %v1192 = vmul.f32 %v1181, %v1185
        %v1193 = vmul.f32 %v1184, %v1185
        %v1194 = vsub.f32 %v1127, %v1186
        %v1195 = vsub.f32 %v1130, %v1187
        %v1196 = vsub.f32 %v1135, %v1188
        %v1197 = vsub.f32 %v1138, %v1189
        %v1198 = vsub.f32 %v1143, %v1190
        %v1199 = vsub.f32 %v1146, %v1191
        %v1200 = vsub.f32 %v1151, %v1192
        %v1201 = vsub.f32 %v1154, %v1193
        %v1202 = vmul.f32 %v1194, %v1194
        %v1203 = vmul.f32 %v1195, %v1195
        %v1204 = vmul.f32 %v1196, %v1196
        %v1205 = vmul.f32 %v1197, %v1197
        %v1206 = vmul.f32 %v1198, %v1198
        %v1207 = vmul.f32 %v1199, %v1199
        %v1208 = vmul.f32 %v1200, %v1200
        %v1209 = vmul.f32 %v1201, %v1201
        %v1210 = vsel %vm979, %v1202, 0.0
        %1211 = vadd.xlane.f32.xlu0 %v1210
        %v1212 = vpop.xlane.xlu0 %1211
        %v1213 = vsel %vm979, %v1203, 0.0
        %1214 = vadd.xlane.f32.xlu0 %v1213
        %v1215 = vpop.xlane.xlu0 %1214
        %v1216 = vsel %vm979, %v1204, 0.0
        %1217 = vadd.xlane.f32.xlu0 %v1216
        %v1218 = vpop.xlane.xlu0 %1217
        %v1219 = vsel %vm979, %v1205, 0.0
        %1220 = vadd.xlane.f32.xlu0 %v1219
        %v1221 = vpop.xlane.xlu0 %1220
        %v1222 = vsel %vm979, %v1206, 0.0
        %1223 = vadd.xlane.f32.xlu0 %v1222
        %v1224 = vpop.xlane.xlu0 %1223
        %v1225 = vsel %vm979, %v1207, 0.0
        %1226 = vadd.xlane.f32.xlu0 %v1225
        %v1227 = vpop.xlane.xlu0 %1226
        %v1228 = vsel %vm979, %v1208, 0.0
        %1229 = vadd.xlane.f32.xlu0 %v1228
        %v1230 = vpop.xlane.xlu0 %1229
        %v1231 = vsel %vm979, %v1209, 0.0
        %1232 = vadd.xlane.f32.xlu0 %v1231
        %v1233 = vpop.xlane.xlu0 %1232
        %v1234 = vmul.f32 %v1212, %v1185
        %v1235 = vmul.f32 %v1215, %v1185
        %v1236 = vmul.f32 %v1218, %v1185
        %v1237 = vmul.f32 %v1221, %v1185
        %v1238 = vmul.f32 %v1224, %v1185
        %v1239 = vmul.f32 %v1227, %v1185
        %v1240 = vmul.f32 %v1230, %v1185
        %v1241 = vmul.f32 %v1233, %v1185
        %v1242 = vadd.f32 %v1234, 1e-05
        %v1243 = vadd.f32 %v1235, 1e-05
        %v1244 = vadd.f32 %v1236, 1e-05
        %v1245 = vadd.f32 %v1237, 1e-05
        %v1246 = vadd.f32 %v1238, 1e-05
        %v1247 = vadd.f32 %v1239, 1e-05
        %v1248 = vadd.f32 %v1240, 1e-05
        %v1249 = vadd.f32 %v1241, 1e-05
        %v1250 = vrsqrt.pop %v1242
        %v1251 = vrsqrt.pop %v1243
        %v1252 = vrsqrt.pop %v1244
        %v1253 = vrsqrt.pop %v1245
        %v1254 = vrsqrt.pop %v1246
        %v1255 = vrsqrt.pop %v1247
        %v1256 = vrsqrt.pop %v1248
        %v1257 = vrsqrt.pop %v1249
        %v1258 = vmul.f32 %v1194, %v1250
        %v1259 = vmul.f32 %v1195, %v1251
        %v1260 = vmul.f32 %v1196, %v1252
        %v1261 = vmul.f32 %v1197, %v1253
        %v1262 = vmul.f32 %v1198, %v1254
        %v1263 = vmul.f32 %v1199, %v1255
        %v1264 = vmul.f32 %v1200, %v1256
        %v1265 = vmul.f32 %v1201, %v1257
        %v1267 = vlaneseq
        %v1268 = vshrl.u32 %v1267, 7
        %v1269 = vsub.s32 0, %v1268
        %v1270 = vrot.slane %v1158, %v1269
        %v1272 = vmul.f32 %v1258, %v1270
        %v1273 = vmul.f32 %v1259, %v1270
        %v1274 = vmul.f32 %v1260, %v1270
        %v1275 = vmul.f32 %v1261, %v1270
        %v1276 = vmul.f32 %v1262, %v1270
        %v1277 = vmul.f32 %v1263, %v1270
        %v1278 = vmul.f32 %v1264, %v1270
        %v1279 = vmul.f32 %v1265, %v1270
        %v1281 = vlaneseq
        %v1282 = vshrl.u32 %v1281, 7
        %v1283 = vsub.s32 0, %v1282
        %v1284 = vrot.slane %v1160, %v1283
        %v1286 = vadd.f32 %v1272, %v1284
        %v1287 = vadd.f32 %v1273, %v1284
        %v1288 = vadd.f32 %v1274, %v1284
        %v1289 = vadd.f32 %v1275, %v1284
        %v1290 = vadd.f32 %v1276, %v1284
        %v1291 = vadd.f32 %v1277, %v1284
        %v1292 = vadd.f32 %v1278, %v1284
        %v1293 = vadd.f32 %v1279, %v1284
        %v1294 = vmul.f32 %v1286, 0.5
        %v1295 = vmul.f32 %v1287, 0.5
        %v1296 = vmul.f32 %v1288, 0.5
        %v1297 = vmul.f32 %v1289, 0.5
        %v1298 = vmul.f32 %v1290, 0.5
        %v1299 = vmul.f32 %v1291, 0.5
        %v1300 = vmul.f32 %v1292, 0.5
        %v1301 = vmul.f32 %v1293, 0.5
        %v1302 = vmul.f32 %v1286, 0.70710677
        %v1303 = vmul.f32 %v1287, 0.70710677
        %v1304 = vmul.f32 %v1288, 0.70710677
        %v1305 = vmul.f32 %v1289, 0.70710677
        %v1306 = vmul.f32 %v1290, 0.70710677
        %v1307 = vmul.f32 %v1291, 0.70710677
        %v1308 = vmul.f32 %v1292, 0.70710677
        %v1309 = vmul.f32 %v1293, 0.70710677
        %v1310 = vand.u32 2147483647, %v1302
        %v1311 = vand.u32 2147483647, %v1303
        %v1312 = vand.u32 2147483647, %v1304
        %v1313 = vand.u32 2147483647, %v1305
        %v1314 = vand.u32 2147483647, %v1306
        %v1315 = vand.u32 2147483647, %v1307
        %v1316 = vand.u32 2147483647, %v1308
        %v1317 = vand.u32 2147483647, %v1309
        %v1318 = vmul.f32 %v1310, 0.3275911
        %v1319 = vmul.f32 %v1311, 0.3275911
        %v1320 = vmul.f32 %v1312, 0.3275911
        %v1321 = vmul.f32 %v1313, 0.3275911
        %v1322 = vmul.f32 %v1314, 0.3275911
        %v1323 = vmul.f32 %v1315, 0.3275911
        %v1324 = vmul.f32 %v1316, 0.3275911
        %v1325 = vmul.f32 %v1317, 0.3275911
        %v1326 = vadd.f32 %v1318, 1.0
        %v1327 = vadd.f32 %v1319, 1.0
        %v1328 = vadd.f32 %v1320, 1.0
        %v1329 = vadd.f32 %v1321, 1.0
        %v1330 = vadd.f32 %v1322, 1.0
        %v1331 = vadd.f32 %v1323, 1.0
        %v1332 = vadd.f32 %v1324, 1.0
        %v1333 = vadd.f32 %v1325, 1.0
        %v1334 = vrcp.pop %v1326
        %v1335 = vmul.f32 1.0, %v1334
        %v1336 = vrcp.pop %v1327
        %v1337 = vmul.f32 1.0, %v1336
        %v1338 = vrcp.pop %v1328
        %v1339 = vmul.f32 1.0, %v1338
        %v1340 = vrcp.pop %v1329
        %v1341 = vmul.f32 1.0, %v1340
        %v1342 = vrcp.pop %v1330
        %v1343 = vmul.f32 1.0, %v1342
        %v1344 = vrcp.pop %v1331
        %v1345 = vmul.f32 1.0, %v1344
        %v1346 = vrcp.pop %v1332
        %v1347 = vmul.f32 1.0, %v1346
        %v1348 = vrcp.pop %v1333
        %v1349 = vmul.f32 1.0, %v1348
        %v1350 = vmul.f32 %v1335, 1.0614054
        %v1351 = vmul.f32 %v1337, 1.0614054
        %v1352 = vmul.f32 %v1339, 1.0614054
        %v1353 = vmul.f32 %v1341, 1.0614054
        %v1354 = vmul.f32 %v1343, 1.0614054
        %v1355 = vmul.f32 %v1345, 1.0614054
        %v1356 = vmul.f32 %v1347, 1.0614054
        %v1357 = vmul.f32 %v1349, 1.0614054
        %v1358 = vadd.f32 %v1350, -1.4531521
        %v1359 = vadd.f32 %v1351, -1.4531521
        %v1360 = vadd.f32 %v1352, -1.4531521
        %v1361 = vadd.f32 %v1353, -1.4531521
        %v1362 = vadd.f32 %v1354, -1.4531521
        %v1363 = vadd.f32 %v1355, -1.4531521
        %v1364 = vadd.f32 %v1356, -1.4531521
        %v1365 = vadd.f32 %v1357, -1.4531521
        %v1366 = vmul.f32 %v1335, %v1358
        %v1367 = vmul.f32 %v1337, %v1359
        %v1368 = vmul.f32 %v1339, %v1360
        %v1369 = vmul.f32 %v1341, %v1361
        %v1370 = vmul.f32 %v1343, %v1362
        %v1371 = vmul.f32 %v1345, %v1363
        %v1372 = vmul.f32 %v1347, %v1364
        %v1373 = vmul.f32 %v1349, %v1365
        %v1374 = vadd.f32 %v1366, 1.4214138
        %v1375 = vadd.f32 %v1367, 1.4214138
        %v1376 = vadd.f32 %v1368, 1.4214138
        %v1377 = vadd.f32 %v1369, 1.4214138
        %v1378 = vadd.f32 %v1370, 1.4214138
        %v1379 = vadd.f32 %v1371, 1.4214138
        %v1380 = vadd.f32 %v1372, 1.4214138
        %v1381 = vadd.f32 %v1373, 1.4214138
        %v1382 = vmul.f32 %v1335, %v1374
        %v1383 = vmul.f32 %v1337, %v1375
        %v1384 = vmul.f32 %v1339, %v1376
        %v1385 = vmul.f32 %v1341, %v1377
        %v1386 = vmul.f32 %v1343, %v1378
        %v1387 = vmul.f32 %v1345, %v1379
        %v1388 = vmul.f32 %v1347, %v1380
        %v1389 = vmul.f32 %v1349, %v1381
        %v1390 = vadd.f32 %v1382, -0.28449672
        %v1391 = vadd.f32 %v1383, -0.28449672
        %v1392 = vadd.f32 %v1384, -0.28449672
        %v1393 = vadd.f32 %v1385, -0.28449672
        %v1394 = vadd.f32 %v1386, -0.28449672
        %v1395 = vadd.f32 %v1387, -0.28449672
        %v1396 = vadd.f32 %v1388, -0.28449672
        %v1397 = vadd.f32 %v1389, -0.28449672
        %v1398 = vmul.f32 %v1335, %v1390
        %v1399 = vmul.f32 %v1337, %v1391
        %v1400 = vmul.f32 %v1339, %v1392
        %v1401 = vmul.f32 %v1341, %v1393
        %v1402 = vmul.f32 %v1343, %v1394
        %v1403 = vmul.f32 %v1345, %v1395
        %v1404 = vmul.f32 %v1347, %v1396
        %v1405 = vmul.f32 %v1349, %v1397
        %v1406 = vadd.f32 %v1398, 0.2548296
        %v1407 = vadd.f32 %v1399, 0.2548296
        %v1408 = vadd.f32 %v1400, 0.2548296
        %v1409 = vadd.f32 %v1401, 0.2548296
        %v1410 = vadd.f32 %v1402, 0.2548296
        %v1411 = vadd.f32 %v1403, 0.2548296
        %v1412 = vadd.f32 %v1404, 0.2548296
        %v1413 = vadd.f32 %v1405, 0.2548296
        %v1414 = vmul.f32 %v1335, %v1406
        %v1415 = vmul.f32 %v1337, %v1407
        %v1416 = vmul.f32 %v1339, %v1408
        %v1417 = vmul.f32 %v1341, %v1409
        %v1418 = vmul.f32 %v1343, %v1410
        %v1419 = vmul.f32 %v1345, %v1411
        %v1420 = vmul.f32 %v1347, %v1412
        %v1421 = vmul.f32 %v1349, %v1413
        %v1422 = vsub.f32 0.0, %v1310
        %v1423 = vsub.f32 0.0, %v1311
        %v1424 = vsub.f32 0.0, %v1312
        %v1425 = vsub.f32 0.0, %v1313
        %v1426 = vsub.f32 0.0, %v1314
        %v1427 = vsub.f32 0.0, %v1315
        %v1428 = vsub.f32 0.0, %v1316
        %v1429 = vsub.f32 0.0, %v1317
        %v1430 = vmul.f32 %v1422, %v1310
        %v1431 = vmul.f32 %v1423, %v1311
        %v1432 = vmul.f32 %v1424, %v1312
        %v1433 = vmul.f32 %v1425, %v1313
        %v1434 = vmul.f32 %v1426, %v1314
        %v1435 = vmul.f32 %v1427, %v1315
        %v1436 = vmul.f32 %v1428, %v1316
        %v1437 = vmul.f32 %v1429, %v1317
        %v1438 = vmul.f32 %v1430, 1.442695
        %v1439 = vpow.pop %v1438
        %v1440 = vmul.f32 %v1431, 1.442695
        %v1441 = vpow.pop %v1440
        %v1442 = vmul.f32 %v1432, 1.442695
        %v1443 = vpow.pop %v1442
        %v1444 = vmul.f32 %v1433, 1.442695
        %v1445 = vpow.pop %v1444
        %v1446 = vmul.f32 %v1434, 1.442695
        %v1447 = vpow.pop %v1446
        %v1448 = vmul.f32 %v1435, 1.442695
        %v1449 = vpow.pop %v1448
        %v1450 = vmul.f32 %v1436, 1.442695
        %v1451 = vpow.pop %v1450
        %v1452 = vmul.f32 %v1437, 1.442695
        %v1453 = vpow.pop %v1452
        %v1454 = vmul.f32 %v1414, %v1439
        %v1455 = vmul.f32 %v1415, %v1441
        %v1456 = vmul.f32 %v1416, %v1443
        %v1457 = vmul.f32 %v1417, %v1445
        %v1458 = vmul.f32 %v1418, %v1447
        %v1459 = vmul.f32 %v1419, %v1449
        %v1460 = vmul.f32 %v1420, %v1451
        %v1461 = vmul.f32 %v1421, %v1453
        %v1462 = vsub.f32 1.0, %v1454
        %v1463 = vsub.f32 1.0, %v1455
        %v1464 = vsub.f32 1.0, %v1456
        %v1465 = vsub.f32 1.0, %v1457
        %v1466 = vsub.f32 1.0, %v1458
        %v1467 = vsub.f32 1.0, %v1459
        %v1468 = vsub.f32 1.0, %v1460
        %v1469 = vsub.f32 1.0, %v1461
        %vm1470 = vcmp.ge.f32.partialorder %v1302, 0.0
        %vm1471 = vcmp.ge.f32.partialorder %v1303, 0.0
        %vm1472 = vcmp.ge.f32.partialorder %v1304, 0.0
        %vm1473 = vcmp.ge.f32.partialorder %v1305, 0.0
        %vm1474 = vcmp.ge.f32.partialorder %v1306, 0.0
        %vm1475 = vcmp.ge.f32.partialorder %v1307, 0.0
        %vm1476 = vcmp.ge.f32.partialorder %v1308, 0.0
        %vm1477 = vcmp.ge.f32.partialorder %v1309, 0.0
        %v1478 = vsub.f32 0.0, %v1462
        %v1479 = vsub.f32 0.0, %v1463
        %v1480 = vsub.f32 0.0, %v1464
        %v1481 = vsub.f32 0.0, %v1465
        %v1482 = vsub.f32 0.0, %v1466
        %v1483 = vsub.f32 0.0, %v1467
        %v1484 = vsub.f32 0.0, %v1468
        %v1485 = vsub.f32 0.0, %v1469
        %v1486 = vsel %vm1470, %v1462, %v1478
        %v1487 = vsel %vm1471, %v1463, %v1479
        %v1488 = vsel %vm1472, %v1464, %v1480
        %v1489 = vsel %vm1473, %v1465, %v1481
        %v1490 = vsel %vm1474, %v1466, %v1482
        %v1491 = vsel %vm1475, %v1467, %v1483
        %v1492 = vsel %vm1476, %v1468, %v1484
        %v1493 = vsel %vm1477, %v1469, %v1485
        %v1494 = vadd.f32 %v1486, 1.0
        %v1495 = vadd.f32 %v1487, 1.0
        %v1496 = vadd.f32 %v1488, 1.0
        %v1497 = vadd.f32 %v1489, 1.0
        %v1498 = vadd.f32 %v1490, 1.0
        %v1499 = vadd.f32 %v1491, 1.0
        %v1500 = vadd.f32 %v1492, 1.0
        %v1501 = vadd.f32 %v1493, 1.0
        %v1502 = vmul.f32 %v1294, %v1494
        %v1503 = vmul.f32 %v1295, %v1495
        %v1504 = vmul.f32 %v1296, %v1496
        %v1505 = vmul.f32 %v1297, %v1497
        %v1506 = vmul.f32 %v1298, %v1498
        %v1507 = vmul.f32 %v1299, %v1499
        %v1508 = vmul.f32 %v1300, %v1500
        %v1509 = vmul.f32 %v1301, %v1501
        %s1510 = sadd.s32 %s785, 1
        %s1511 = smul.u32 %s1510, 20
        %s1512 = smul.addr %s1511, 4
        %s1513 = scalar_lea.vmem %s3, %s1512
        %v1514 = vld [vmem:[%s1513] sm:$0xf]
        %v1515 = vld [vmem:[%s1513 + $0x4] sm:$0xf]
        %v1516 = vld [vmem:[%s1513 + $0x8] sm:$0xf]
        %v1517 = vld [vmem:[%s1513 + $0xc] sm:$0xf]
        %v1518 = vld [vmem:[%s1513 + $0x10] sm:$0xf]
        %v1519 = vld [vmem:[%s1513 + $0x14] sm:$0xf]
        %v1520 = vld [vmem:[%s1513 + $0x18] sm:$0xf]
        %v1521 = vld [vmem:[%s1513 + $0x1c] sm:$0xf]
        %v1522 = vld [vmem:[%s1513 + $0x20] sm:$0xf]
        %v1523 = vld [vmem:[%s1513 + $0x24] sm:$0xf]
        %v1524 = vld [vmem:[%s1513 + $0x28] sm:$0xf]
        %v1525 = vld [vmem:[%s1513 + $0x2c] sm:$0xf]
        %v1526 = vld [vmem:[%s1513 + $0x30] sm:$0xf]
        %v1527 = vld [vmem:[%s1513 + $0x34] sm:$0xf]
        %v1528 = vld [vmem:[%s1513 + $0x38] sm:$0xf]
        %v1529 = vld [vmem:[%s1513 + $0x3c] sm:$0xf]
        %v1530 = vld [vmem:[%s1513 + $0x40] sm:$0xf]
        %v1531 = vld [vmem:[%s1513 + $0x44] sm:$0xf]
        %v1532 = vld [vmem:[%s1513 + $0x48] sm:$0xf]
        %v1533 = vld [vmem:[%s1513 + $0x4c] sm:$0xf]
        %s1534 = scalar_lea.vmem %s4, %s1510
        %v1535 = vld [vmem:[%s1534] sm:$0x1]
        %v1536 = vmul.f32 %v1502, %v418
        %v1537 = vmul.f32 %v1503, %v419
        %v1538 = vmul.f32 %v1504, %v420
        %v1539 = vmul.f32 %v1505, %v421
        %v1540 = vmul.f32 %v1506, %v422
        %v1541 = vmul.f32 %v1507, %v423
        %v1542 = vmul.f32 %v1508, %v424
        %v1543 = vmul.f32 %v1509, %v425
        %v1544 = vrot.slane %v1536, 6
        %v1545 = vrot.slane %v1537, 6
        %v1546 = vrot.slane %v1538, 6
        %v1547 = vrot.slane %v1539, 6
        %v1548 = vrot.slane %v1540, 6
        %v1549 = vrot.slane %v1541, 6
        %v1550 = vrot.slane %v1542, 6
        %v1551 = vrot.slane %v1543, 6
        %v1552 = vsel %vm446, %v1550, %v1551
        %v1553 = vsel %vm446, %v1549, %v1550
        %v1554 = vsel %vm446, %v1548, %v1549
        %v1555 = vsel %vm446, %v1547, %v1548
        %v1556 = vsel %vm446, %v1546, %v1547
        %v1557 = vsel %vm446, %v1545, %v1546
        %v1558 = vsel %vm446, %v1544, %v1545
        %v1559 = vsel %vm446, %v1551, %v1544
        %v1560 = vrot.slane %v1536, 7
        %v1561 = vrot.slane %v1537, 7
        %v1562 = vrot.slane %v1538, 7
        %v1563 = vrot.slane %v1539, 7
        %v1564 = vrot.slane %v1540, 7
        %v1565 = vrot.slane %v1541, 7
        %v1566 = vrot.slane %v1542, 7
        %v1567 = vrot.slane %v1543, 7
        %v1568 = vsel %vm463, %v1566, %v1567
        %v1569 = vsel %vm463, %v1565, %v1566
        %v1570 = vsel %vm463, %v1564, %v1565
        %v1571 = vsel %vm463, %v1563, %v1564
        %v1572 = vsel %vm463, %v1562, %v1563
        %v1573 = vsel %vm463, %v1561, %v1562
        %v1574 = vsel %vm463, %v1560, %v1561
        %v1575 = vsel %vm463, %v1567, %v1560
        %v1576 = vrot.slane %v1536, 1
        %v1577 = vrot.slane %v1537, 1
        %v1578 = vrot.slane %v1538, 1
        %v1579 = vrot.slane %v1539, 1
        %v1580 = vrot.slane %v1540, 1
        %v1581 = vrot.slane %v1541, 1
        %v1582 = vrot.slane %v1542, 1
        %v1583 = vrot.slane %v1543, 1
        %v1584 = vsel %vm480, %v1582, %v1583
        %v1585 = vsel %vm480, %v1581, %v1582
        %v1586 = vsel %vm480, %v1580, %v1581
        %v1587 = vsel %vm480, %v1579, %v1580
        %v1588 = vsel %vm480, %v1578, %v1579
        %v1589 = vsel %vm480, %v1577, %v1578
        %v1590 = vsel %vm480, %v1576, %v1577
        %v1591 = vsel %vm480, %v1583, %v1576
        %v1592 = vrot.slane %v1536, 2
        %v1593 = vrot.slane %v1537, 2
        %v1594 = vrot.slane %v1538, 2
        %v1595 = vrot.slane %v1539, 2
        %v1596 = vrot.slane %v1540, 2
        %v1597 = vrot.slane %v1541, 2
        %v1598 = vrot.slane %v1542, 2
        %v1599 = vrot.slane %v1543, 2
        %v1600 = vsel %vm497, %v1598, %v1599
        %v1601 = vsel %vm497, %v1597, %v1598
        %v1602 = vsel %vm497, %v1596, %v1597
        %v1603 = vsel %vm497, %v1595, %v1596
        %v1604 = vsel %vm497, %v1594, %v1595
        %v1605 = vsel %vm497, %v1593, %v1594
        %v1606 = vsel %vm497, %v1592, %v1593
        %v1607 = vsel %vm497, %v1599, %v1592
        %1616 = vrot.lane.b32.xlu0 %v1575, 32
        %v1617 = vpop.permute.xlu0 %1616
        %1618 = vrot.lane.b32.xlu0 %v1574, 32
        %v1619 = vpop.permute.xlu0 %1618
        %1620 = vrot.lane.b32.xlu0 %v1573, 32
        %v1621 = vpop.permute.xlu0 %1620
        %1622 = vrot.lane.b32.xlu0 %v1572, 32
        %v1623 = vpop.permute.xlu0 %1622
        %1624 = vrot.lane.b32.xlu0 %v1571, 32
        %v1625 = vpop.permute.xlu0 %1624
        %1626 = vrot.lane.b32.xlu0 %v1570, 32
        %v1627 = vpop.permute.xlu0 %1626
        %1628 = vrot.lane.b32.xlu0 %v1569, 32
        %v1629 = vpop.permute.xlu0 %1628
        %1630 = vrot.lane.b32.xlu0 %v1568, 32
        %v1631 = vpop.permute.xlu0 %1630
        %1648 = vrot.lane.b32.xlu0 %v1536, 64
        %v1649 = vpop.permute.xlu0 %1648
        %1650 = vrot.lane.b32.xlu0 %v1537, 64
        %v1651 = vpop.permute.xlu0 %1650
        %1652 = vrot.lane.b32.xlu0 %v1538, 64
        %v1653 = vpop.permute.xlu0 %1652
        %1654 = vrot.lane.b32.xlu0 %v1539, 64
        %v1655 = vpop.permute.xlu0 %1654
        %1656 = vrot.lane.b32.xlu0 %v1540, 64
        %v1657 = vpop.permute.xlu0 %1656
        %1658 = vrot.lane.b32.xlu0 %v1541, 64
        %v1659 = vpop.permute.xlu0 %1658
        %1660 = vrot.lane.b32.xlu0 %v1542, 64
        %v1661 = vpop.permute.xlu0 %1660
        %1662 = vrot.lane.b32.xlu0 %v1543, 64
        %v1663 = vpop.permute.xlu0 %1662
        %1680 = vrot.lane.b32.xlu0 %v1590, 96
        %v1681 = vpop.permute.xlu0 %1680
        %1682 = vrot.lane.b32.xlu0 %v1589, 96
        %v1683 = vpop.permute.xlu0 %1682
        %1684 = vrot.lane.b32.xlu0 %v1588, 96
        %v1685 = vpop.permute.xlu0 %1684
        %1686 = vrot.lane.b32.xlu0 %v1587, 96
        %v1687 = vpop.permute.xlu0 %1686
        %1688 = vrot.lane.b32.xlu0 %v1586, 96
        %v1689 = vpop.permute.xlu0 %1688
        %1690 = vrot.lane.b32.xlu0 %v1585, 96
        %v1691 = vpop.permute.xlu0 %1690
        %1692 = vrot.lane.b32.xlu0 %v1584, 96
        %v1693 = vpop.permute.xlu0 %1692
        %1694 = vrot.lane.b32.xlu0 %v1591, 96
        %v1695 = vpop.permute.xlu0 %1694
        %v1704 = vsel %vm979, %v1559, %v1617
        %v1705 = vsel %vm979, %v1558, %v1619
        %v1706 = vsel %vm979, %v1557, %v1621
        %v1707 = vsel %vm979, %v1556, %v1623
        %v1708 = vsel %vm979, %v1555, %v1625
        %v1709 = vsel %vm979, %v1554, %v1627
        %v1710 = vsel %vm979, %v1553, %v1629
        %v1711 = vsel %vm979, %v1552, %v1631
        %v1712 = vsel %vm988, %v1704, %v1649
        %v1713 = vsel %vm988, %v1705, %v1651
        %v1714 = vsel %vm988, %v1706, %v1653
        %v1715 = vsel %vm988, %v1707, %v1655
        %v1716 = vsel %vm988, %v1708, %v1657
        %v1717 = vsel %vm988, %v1709, %v1659
        %v1718 = vsel %vm988, %v1710, %v1661
        %v1719 = vsel %vm988, %v1711, %v1663
        %v1720 = vsel %vm997, %v1712, %v1681
        %v1721 = vsel %vm997, %v1713, %v1683
        %v1722 = vsel %vm997, %v1714, %v1685
        %v1723 = vsel %vm997, %v1715, %v1687
        %v1724 = vsel %vm997, %v1716, %v1689
        %v1725 = vsel %vm997, %v1717, %v1691
        %v1726 = vsel %vm997, %v1718, %v1693
        %v1727 = vsel %vm997, %v1719, %v1695
        %v1728 = vpack.c.bf16 %v1721, %v1720
        %v1729 = vpack.c.bf16 %v1605, %v1606
        %v1730 = vpack.c.bf16 %v1723, %v1722
        %v1731 = vpack.c.bf16 %v1603, %v1604
        %v1732 = vpack.c.bf16 %v1725, %v1724
        %v1733 = vpack.c.bf16 %v1601, %v1602
        %v1734 = vpack.c.bf16 %v1727, %v1726
        %v1735 = vpack.c.bf16 %v1607, %v1600
        %v1737 = vlaneseq
        %v1738 = vshrl.u32 %v1737, 7
        %v1739 = vsub.s32 0, %v1738
        %v1740 = vrot.slane %v1535, %v1739
        %v1762 = vunpack.c.l.b16 %v1514
        %v1763 = vunpack.c.l.b16 %v1515
        %v1764 = vunpack.c.l.b16 %v1516
        %v1765 = vunpack.c.l.b16 %v1517
        %v1766 = vunpack.c.l.b16 %v1518
        %v1767 = vunpack.c.l.b16 %v1519
        %v1768 = vunpack.c.l.b16 %v1520
        %v1769 = vunpack.c.l.b16 %v1521
        %v1770 = vunpack.c.l.b16 %v1522
        %v1771 = vunpack.c.l.b16 %v1523
        %v1772 = vunpack.c.l.b16 %v1524
        %v1773 = vunpack.c.l.b16 %v1525
        %v1774 = vunpack.c.l.b16 %v1526
        %v1775 = vunpack.c.l.b16 %v1527
        %v1776 = vunpack.c.l.b16 %v1528
        %v1777 = vunpack.c.l.b16 %v1529
        %v1778 = vunpack.c.l.b16 %v1530
        %v1779 = vunpack.c.l.b16 %v1531
        %v1780 = vunpack.c.l.b16 %v1532
        %v1781 = vunpack.c.l.b16 %v1533
        %v1782 = vpack.c.b16 %v1763, %v1762
        %v1783 = vpack.c.b16 %v1765, %v1764
        %v1784 = vpack.c.b16 %v1767, %v1766
        %v1785 = vpack.c.b16 %v1769, %v1768
        %v1786 = vpack.c.b16 %v1771, %v1770
        %v1787 = vpack.c.b16 %v1773, %v1772
        %v1788 = vpack.c.b16 %v1775, %v1774
        %v1789 = vpack.c.b16 %v1777, %v1776
        %v1790 = vpack.c.b16 %v1779, %v1778
        %v1791 = vpack.c.b16 %v1781, %v1780
        %v1803 = vsel %vm979, %v1729, 0
        %v1806 = vsel %vm979, %v1731, 0
        %v1809 = vsel %vm979, %v1733, 0
        %v1812 = vsel %vm979, %v1735, 0
        %1814 = vmatprep.subr.bf16.mxu0 0
        %1815 = vmatpush1.bf16.msra.mxu0 %v1782
        %1816 = vmatprep.subr.bf16.mxu0 0
        %1817 = vmatpush1.bf16.msra.mxu0 %v1783
        %1818 = vmatprep.subr.bf16.mxu0 0
        %1819 = vmatpush1.bf16.msra.mxu0 %v1784
        %1820 = vmatprep.subr.bf16.mxu0 0
        %1821 = vmatpush1.bf16.msra.mxu0 %v1785
        %1822 = vmatprep.subr.bf16.mxu0 0
        %1823 = vmatpush1.bf16.msra.mxu0 %v1786
        %1824 = vmatprep.subr.bf16.mxu0 0
        %1825 = vmatpush1.bf16.msra.mxu0 %v1787
        %1826 = vmatprep.subr.bf16.mxu0 0
        %1827 = vmatpush1.bf16.msra.mxu0 %v1788
        %1828 = vmatprep.subr.bf16.mxu0 0
        %1829 = vmatpush1.bf16.msra.mxu0 %v1789
        %1830 = vmatprep.subr.bf16.mxu0 0
        %1831 = vmatpush1.bf16.msra.mxu0 %v1790
        %1832 = vmatprep.subr.bf16.mxu0 0
        %1833 = vmatpush1.bf16.msra.mxu0 %v1791
        %1834 = vmatprep.subr.bf16.mxu0 0
        %1835 = vmatpush1.bf16.msra.mxu0 0
        %1836 = vmatprep.subr.bf16.mxu0 0
        %1837 = vmatpush1.bf16.msra.mxu0 0
        %1838 = vmatprep.subr.bf16.mxu0 0
        %1839 = vmatpush1.bf16.msra.mxu0 0
        %1840 = vmatprep.subr.bf16.mxu0 0
        %1841 = vmatpush1.bf16.msra.mxu0 0
        %1842 = vmatprep.subr.bf16.mxu0 0
        %1843 = vmatpush1.bf16.msra.mxu0 0
        %1844 = vmatprep.subr.bf16.mxu0 0
        %1845 = vmatpush1.bf16.msra.mxu0 0
        %1846 = vmatprep.mubr.bf16.mxu0 %v1803
        %1847 = vmatmul.mubr.bf16.gmra.mrb[0].mxu0 %v1728
        %v1848 = vpop.f32.mrb[0].mxu0
        %v1849 = vadd.f32 %v1740, %v1848
        %v1850 = vpop.f32.mrb[0].mxu0
        %v1851 = vpop.f32.mrb[0].mxu0
        %v1852 = vadd.f32 %v1740, %v1851
        %v1853 = vpop.f32.mrb[0].mxu0
        %1854 = vmatprep.mubr.bf16.mxu0 %v1806
        %1855 = vmatmul.mubr.bf16.gmra.mrb[0].mxu0 %v1730
        %v1856 = vpop.f32.mrb[0].mxu0
        %v1857 = vadd.f32 %v1740, %v1856
        %v1858 = vpop.f32.mrb[0].mxu0
        %v1859 = vpop.f32.mrb[0].mxu0
        %v1860 = vadd.f32 %v1740, %v1859
        %v1861 = vpop.f32.mrb[0].mxu0
        %1862 = vmatprep.mubr.bf16.mxu0 %v1809
        %1863 = vmatmul.mubr.bf16.gmra.mrb[0].mxu0 %v1732
        %v1864 = vpop.f32.mrb[0].mxu0
        %v1865 = vadd.f32 %v1740, %v1864
        %v1866 = vpop.f32.mrb[0].mxu0
        %v1867 = vpop.f32.mrb[0].mxu0
        %v1868 = vadd.f32 %v1740, %v1867
        %v1869 = vpop.f32.mrb[0].mxu0
        %1870 = vmatprep.mubr.bf16.mxu0 %v1812
        %1871 = vmatmul.mubr.bf16.gmra.mrb[0].mxu0 %v1734
        %v1872 = vpop.f32.mrb[0].mxu0
        %v1873 = vadd.f32 %v1740, %v1872
        %v1874 = vpop.f32.mrb[0].mxu0
        %v1875 = vpop.f32.mrb[0].mxu0
        %v1876 = vadd.f32 %v1740, %v1875
        %v1877 = vpop.f32.mrb[0].mxu0
        %1878 = vdwg.mxu0
        %s1879 = scalar_lea.vmem %s5, %s1510
        %v1880 = vld [vmem:[%s1879] sm:$0x1]
        %s1881 = scalar_lea.vmem %s6, %s1510
        %v1882 = vld [vmem:[%s1881] sm:$0x1]
        %v1883 = vsel %vm979, %v1849, 0.0
        %1884 = vadd.xlane.f32.xlu0 %v1883
        %v1885 = vpop.xlane.xlu0 %1884
        %v1886 = vsel %vm979, %v1852, 0.0
        %1887 = vadd.xlane.f32.xlu0 %v1886
        %v1888 = vpop.xlane.xlu0 %1887
        %v1889 = vsel %vm979, %v1857, 0.0
        %1890 = vadd.xlane.f32.xlu0 %v1889
        %v1891 = vpop.xlane.xlu0 %1890
        %v1892 = vsel %vm979, %v1860, 0.0
        %1893 = vadd.xlane.f32.xlu0 %v1892
        %v1894 = vpop.xlane.xlu0 %1893
        %v1895 = vsel %vm979, %v1865, 0.0
        %1896 = vadd.xlane.f32.xlu0 %v1895
        %v1897 = vpop.xlane.xlu0 %1896
        %v1898 = vsel %vm979, %v1868, 0.0
        %1899 = vadd.xlane.f32.xlu0 %v1898
        %v1900 = vpop.xlane.xlu0 %1899
        %v1901 = vsel %vm979, %v1873, 0.0
        %1902 = vadd.xlane.f32.xlu0 %v1901
        %v1903 = vpop.xlane.xlu0 %1902
        %v1904 = vsel %vm979, %v1876, 0.0
        %1905 = vadd.xlane.f32.xlu0 %v1904
        %v1906 = vpop.xlane.xlu0 %1905
        %v1907 = vmul.f32 %v1885, %v1185
        %v1908 = vmul.f32 %v1888, %v1185
        %v1909 = vmul.f32 %v1891, %v1185
        %v1910 = vmul.f32 %v1894, %v1185
        %v1911 = vmul.f32 %v1897, %v1185
        %v1912 = vmul.f32 %v1900, %v1185
        %v1913 = vmul.f32 %v1903, %v1185
        %v1914 = vmul.f32 %v1906, %v1185
        %v1915 = vsub.f32 %v1849, %v1907
        %v1916 = vsub.f32 %v1852, %v1908
        %v1917 = vsub.f32 %v1857, %v1909
        %v1918 = vsub.f32 %v1860, %v1910
        %v1919 = vsub.f32 %v1865, %v1911
        %v1920 = vsub.f32 %v1868, %v1912
        %v1921 = vsub.f32 %v1873, %v1913
        %v1922 = vsub.f32 %v1876, %v1914
        %v1923 = vmul.f32 %v1915, %v1915
        %v1924 = vmul.f32 %v1916, %v1916
        %v1925 = vmul.f32 %v1917, %v1917
        %v1926 = vmul.f32 %v1918, %v1918
        %v1927 = vmul.f32 %v1919, %v1919
        %v1928 = vmul.f32 %v1920, %v1920
        %v1929 = vmul.f32 %v1921, %v1921
        %v1930 = vmul.f32 %v1922, %v1922
        %v1931 = vsel %vm979, %v1923, 0.0
        %1932 = vadd.xlane.f32.xlu0 %v1931
        %v1933 = vpop.xlane.xlu0 %1932
        %v1934 = vsel %vm979, %v1924, 0.0
        %1935 = vadd.xlane.f32.xlu0 %v1934
        %v1936 = vpop.xlane.xlu0 %1935
        %v1937 = vsel %vm979, %v1925, 0.0
        %1938 = vadd.xlane.f32.xlu0 %v1937
        %v1939 = vpop.xlane.xlu0 %1938
        %v1940 = vsel %vm979, %v1926, 0.0
        %1941 = vadd.xlane.f32.xlu0 %v1940
        %v1942 = vpop.xlane.xlu0 %1941
        %v1943 = vsel %vm979, %v1927, 0.0
        %1944 = vadd.xlane.f32.xlu0 %v1943
        %v1945 = vpop.xlane.xlu0 %1944
        %v1946 = vsel %vm979, %v1928, 0.0
        %1947 = vadd.xlane.f32.xlu0 %v1946
        %v1948 = vpop.xlane.xlu0 %1947
        %v1949 = vsel %vm979, %v1929, 0.0
        %1950 = vadd.xlane.f32.xlu0 %v1949
        %v1951 = vpop.xlane.xlu0 %1950
        %v1952 = vsel %vm979, %v1930, 0.0
        %1953 = vadd.xlane.f32.xlu0 %v1952
        %v1954 = vpop.xlane.xlu0 %1953
        %v1955 = vmul.f32 %v1933, %v1185
        %v1956 = vmul.f32 %v1936, %v1185
        %v1957 = vmul.f32 %v1939, %v1185
        %v1958 = vmul.f32 %v1942, %v1185
        %v1959 = vmul.f32 %v1945, %v1185
        %v1960 = vmul.f32 %v1948, %v1185
        %v1961 = vmul.f32 %v1951, %v1185
        %v1962 = vmul.f32 %v1954, %v1185
        %v1963 = vadd.f32 %v1955, 1e-05
        %v1964 = vadd.f32 %v1956, 1e-05
        %v1965 = vadd.f32 %v1957, 1e-05
        %v1966 = vadd.f32 %v1958, 1e-05
        %v1967 = vadd.f32 %v1959, 1e-05
        %v1968 = vadd.f32 %v1960, 1e-05
        %v1969 = vadd.f32 %v1961, 1e-05
        %v1970 = vadd.f32 %v1962, 1e-05
        %v1971 = vrsqrt.pop %v1963
        %v1972 = vrsqrt.pop %v1964
        %v1973 = vrsqrt.pop %v1965
        %v1974 = vrsqrt.pop %v1966
        %v1975 = vrsqrt.pop %v1967
        %v1976 = vrsqrt.pop %v1968
        %v1977 = vrsqrt.pop %v1969
        %v1978 = vrsqrt.pop %v1970
        %v1979 = vmul.f32 %v1915, %v1971
        %v1980 = vmul.f32 %v1916, %v1972
        %v1981 = vmul.f32 %v1917, %v1973
        %v1982 = vmul.f32 %v1918, %v1974
        %v1983 = vmul.f32 %v1919, %v1975
        %v1984 = vmul.f32 %v1920, %v1976
        %v1985 = vmul.f32 %v1921, %v1977
        %v1986 = vmul.f32 %v1922, %v1978
        %v1988 = vlaneseq
        %v1989 = vshrl.u32 %v1988, 7
        %v1990 = vsub.s32 0, %v1989
        %v1991 = vrot.slane %v1880, %v1990
        %v1993 = vmul.f32 %v1979, %v1991
        %v1994 = vmul.f32 %v1980, %v1991
        %v1995 = vmul.f32 %v1981, %v1991
        %v1996 = vmul.f32 %v1982, %v1991
        %v1997 = vmul.f32 %v1983, %v1991
        %v1998 = vmul.f32 %v1984, %v1991
        %v1999 = vmul.f32 %v1985, %v1991
        %v2000 = vmul.f32 %v1986, %v1991
        %v2002 = vlaneseq
        %v2003 = vshrl.u32 %v2002, 7
        %v2004 = vsub.s32 0, %v2003
        %v2005 = vrot.slane %v1882, %v2004
        %v2007 = vadd.f32 %v1993, %v2005
        %v2008 = vadd.f32 %v1994, %v2005
        %v2009 = vadd.f32 %v1995, %v2005
        %v2010 = vadd.f32 %v1996, %v2005
        %v2011 = vadd.f32 %v1997, %v2005
        %v2012 = vadd.f32 %v1998, %v2005
        %v2013 = vadd.f32 %v1999, %v2005
        %v2014 = vadd.f32 %v2000, %v2005
        %v2015 = vmul.f32 %v2007, 0.5
        %v2016 = vmul.f32 %v2008, 0.5
        %v2017 = vmul.f32 %v2009, 0.5
        %v2018 = vmul.f32 %v2010, 0.5
        %v2019 = vmul.f32 %v2011, 0.5
        %v2020 = vmul.f32 %v2012, 0.5
        %v2021 = vmul.f32 %v2013, 0.5
        %v2022 = vmul.f32 %v2014, 0.5
        %v2023 = vmul.f32 %v2007, 0.70710677
        %v2024 = vmul.f32 %v2008, 0.70710677
        %v2025 = vmul.f32 %v2009, 0.70710677
        %v2026 = vmul.f32 %v2010, 0.70710677
        %v2027 = vmul.f32 %v2011, 0.70710677
        %v2028 = vmul.f32 %v2012, 0.70710677
        %v2029 = vmul.f32 %v2013, 0.70710677
        %v2030 = vmul.f32 %v2014, 0.70710677
        %v2031 = vand.u32 2147483647, %v2023
        %v2032 = vand.u32 2147483647, %v2024
        %v2033 = vand.u32 2147483647, %v2025
        %v2034 = vand.u32 2147483647, %v2026
        %v2035 = vand.u32 2147483647, %v2027
        %v2036 = vand.u32 2147483647, %v2028
        %v2037 = vand.u32 2147483647, %v2029
        %v2038 = vand.u32 2147483647, %v2030
        %v2039 = vmul.f32 %v2031, 0.3275911
        %v2040 = vmul.f32 %v2032, 0.3275911
        %v2041 = vmul.f32 %v2033, 0.3275911
        %v2042 = vmul.f32 %v2034, 0.3275911
        %v2043 = vmul.f32 %v2035, 0.3275911
        %v2044 = vmul.f32 %v2036, 0.3275911
        %v2045 = vmul.f32 %v2037, 0.3275911
        %v2046 = vmul.f32 %v2038, 0.3275911
        %v2047 = vadd.f32 %v2039, 1.0
        %v2048 = vadd.f32 %v2040, 1.0
        %v2049 = vadd.f32 %v2041, 1.0
        %v2050 = vadd.f32 %v2042, 1.0
        %v2051 = vadd.f32 %v2043, 1.0
        %v2052 = vadd.f32 %v2044, 1.0
        %v2053 = vadd.f32 %v2045, 1.0
        %v2054 = vadd.f32 %v2046, 1.0
        %v2055 = vrcp.pop %v2047
        %v2056 = vmul.f32 1.0, %v2055
        %v2057 = vrcp.pop %v2048
        %v2058 = vmul.f32 1.0, %v2057
        %v2059 = vrcp.pop %v2049
        %v2060 = vmul.f32 1.0, %v2059
        %v2061 = vrcp.pop %v2050
        %v2062 = vmul.f32 1.0, %v2061
        %v2063 = vrcp.pop %v2051
        %v2064 = vmul.f32 1.0, %v2063
        %v2065 = vrcp.pop %v2052
        %v2066 = vmul.f32 1.0, %v2065
        %v2067 = vrcp.pop %v2053
        %v2068 = vmul.f32 1.0, %v2067
        %v2069 = vrcp.pop %v2054
        %v2070 = vmul.f32 1.0, %v2069
        %v2071 = vmul.f32 %v2056, 1.0614054
        %v2072 = vmul.f32 %v2058, 1.0614054
        %v2073 = vmul.f32 %v2060, 1.0614054
        %v2074 = vmul.f32 %v2062, 1.0614054
        %v2075 = vmul.f32 %v2064, 1.0614054
        %v2076 = vmul.f32 %v2066, 1.0614054
        %v2077 = vmul.f32 %v2068, 1.0614054
        %v2078 = vmul.f32 %v2070, 1.0614054
        %v2079 = vadd.f32 %v2071, -1.4531521
        %v2080 = vadd.f32 %v2072, -1.4531521
        %v2081 = vadd.f32 %v2073, -1.4531521
        %v2082 = vadd.f32 %v2074, -1.4531521
        %v2083 = vadd.f32 %v2075, -1.4531521
        %v2084 = vadd.f32 %v2076, -1.4531521
        %v2085 = vadd.f32 %v2077, -1.4531521
        %v2086 = vadd.f32 %v2078, -1.4531521
        %v2087 = vmul.f32 %v2056, %v2079
        %v2088 = vmul.f32 %v2058, %v2080
        %v2089 = vmul.f32 %v2060, %v2081
        %v2090 = vmul.f32 %v2062, %v2082
        %v2091 = vmul.f32 %v2064, %v2083
        %v2092 = vmul.f32 %v2066, %v2084
        %v2093 = vmul.f32 %v2068, %v2085
        %v2094 = vmul.f32 %v2070, %v2086
        %v2095 = vadd.f32 %v2087, 1.4214138
        %v2096 = vadd.f32 %v2088, 1.4214138
        %v2097 = vadd.f32 %v2089, 1.4214138
        %v2098 = vadd.f32 %v2090, 1.4214138
        %v2099 = vadd.f32 %v2091, 1.4214138
        %v2100 = vadd.f32 %v2092, 1.4214138
        %v2101 = vadd.f32 %v2093, 1.4214138
        %v2102 = vadd.f32 %v2094, 1.4214138
        %v2103 = vmul.f32 %v2056, %v2095
        %v2104 = vmul.f32 %v2058, %v2096
        %v2105 = vmul.f32 %v2060, %v2097
        %v2106 = vmul.f32 %v2062, %v2098
        %v2107 = vmul.f32 %v2064, %v2099
        %v2108 = vmul.f32 %v2066, %v2100
        %v2109 = vmul.f32 %v2068, %v2101
        %v2110 = vmul.f32 %v2070, %v2102
        %v2111 = vadd.f32 %v2103, -0.28449672
        %v2112 = vadd.f32 %v2104, -0.28449672
        %v2113 = vadd.f32 %v2105, -0.28449672
        %v2114 = vadd.f32 %v2106, -0.28449672
        %v2115 = vadd.f32 %v2107, -0.28449672
        %v2116 = vadd.f32 %v2108, -0.28449672
        %v2117 = vadd.f32 %v2109, -0.28449672
        %v2118 = vadd.f32 %v2110, -0.28449672
        %v2119 = vmul.f32 %v2056, %v2111
        %v2120 = vmul.f32 %v2058, %v2112
        %v2121 = vmul.f32 %v2060, %v2113
        %v2122 = vmul.f32 %v2062, %v2114
        %v2123 = vmul.f32 %v2064, %v2115
        %v2124 = vmul.f32 %v2066, %v2116
        %v2125 = vmul.f32 %v2068, %v2117
        %v2126 = vmul.f32 %v2070, %v2118
        %v2127 = vadd.f32 %v2119, 0.2548296
        %v2128 = vadd.f32 %v2120, 0.2548296
        %v2129 = vadd.f32 %v2121, 0.2548296
        %v2130 = vadd.f32 %v2122, 0.2548296
        %v2131 = vadd.f32 %v2123, 0.2548296
        %v2132 = vadd.f32 %v2124, 0.2548296
        %v2133 = vadd.f32 %v2125, 0.2548296
        %v2134 = vadd.f32 %v2126, 0.2548296
        %v2135 = vmul.f32 %v2056, %v2127
        %v2136 = vmul.f32 %v2058, %v2128
        %v2137 = vmul.f32 %v2060, %v2129
        %v2138 = vmul.f32 %v2062, %v2130
        %v2139 = vmul.f32 %v2064, %v2131
        %v2140 = vmul.f32 %v2066, %v2132
        %v2141 = vmul.f32 %v2068, %v2133
        %v2142 = vmul.f32 %v2070, %v2134
        %v2143 = vsub.f32 0.0, %v2031
        %v2144 = vsub.f32 0.0, %v2032
        %v2145 = vsub.f32 0.0, %v2033
        %v2146 = vsub.f32 0.0, %v2034
        %v2147 = vsub.f32 0.0, %v2035
        %v2148 = vsub.f32 0.0, %v2036
        %v2149 = vsub.f32 0.0, %v2037
        %v2150 = vsub.f32 0.0, %v2038
        %v2151 = vmul.f32 %v2143, %v2031
        %v2152 = vmul.f32 %v2144, %v2032
        %v2153 = vmul.f32 %v2145, %v2033
        %v2154 = vmul.f32 %v2146, %v2034
        %v2155 = vmul.f32 %v2147, %v2035
        %v2156 = vmul.f32 %v2148, %v2036
        %v2157 = vmul.f32 %v2149, %v2037
        %v2158 = vmul.f32 %v2150, %v2038
        %v2159 = vmul.f32 %v2151, 1.442695
        %v2160 = vpow.pop %v2159
        %v2161 = vmul.f32 %v2152, 1.442695
        %v2162 = vpow.pop %v2161
        %v2163 = vmul.f32 %v2153, 1.442695
        %v2164 = vpow.pop %v2163
        %v2165 = vmul.f32 %v2154, 1.442695
        %v2166 = vpow.pop %v2165
        %v2167 = vmul.f32 %v2155, 1.442695
        %v2168 = vpow.pop %v2167
        %v2169 = vmul.f32 %v2156, 1.442695
        %v2170 = vpow.pop %v2169
        %v2171 = vmul.f32 %v2157, 1.442695
        %v2172 = vpow.pop %v2171
        %v2173 = vmul.f32 %v2158, 1.442695
        %v2174 = vpow.pop %v2173
        %v2175 = vmul.f32 %v2135, %v2160
        %v2176 = vmul.f32 %v2136, %v2162
        %v2177 = vmul.f32 %v2137, %v2164
        %v2178 = vmul.f32 %v2138, %v2166
        %v2179 = vmul.f32 %v2139, %v2168
        %v2180 = vmul.f32 %v2140, %v2170
        %v2181 = vmul.f32 %v2141, %v2172
        %v2182 = vmul.f32 %v2142, %v2174
        %v2183 = vsub.f32 1.0, %v2175
        %v2184 = vsub.f32 1.0, %v2176
        %v2185 = vsub.f32 1.0, %v2177
        %v2186 = vsub.f32 1.0, %v2178
        %v2187 = vsub.f32 1.0, %v2179
        %v2188 = vsub.f32 1.0, %v2180
        %v2189 = vsub.f32 1.0, %v2181
        %v2190 = vsub.f32 1.0, %v2182
        %vm2191 = vcmp.ge.f32.partialorder %v2023, 0.0
        %vm2192 = vcmp.ge.f32.partialorder %v2024, 0.0
        %vm2193 = vcmp.ge.f32.partialorder %v2025, 0.0
        %vm2194 = vcmp.ge.f32.partialorder %v2026, 0.0
        %vm2195 = vcmp.ge.f32.partialorder %v2027, 0.0
        %vm2196 = vcmp.ge.f32.partialorder %v2028, 0.0
        %vm2197 = vcmp.ge.f32.partialorder %v2029, 0.0
        %vm2198 = vcmp.ge.f32.partialorder %v2030, 0.0
        %v2199 = vsub.f32 0.0, %v2183
        %v2200 = vsub.f32 0.0, %v2184
        %v2201 = vsub.f32 0.0, %v2185
        %v2202 = vsub.f32 0.0, %v2186
        %v2203 = vsub.f32 0.0, %v2187
        %v2204 = vsub.f32 0.0, %v2188
        %v2205 = vsub.f32 0.0, %v2189
        %v2206 = vsub.f32 0.0, %v2190
        %v2207 = vsel %vm2191, %v2183, %v2199
        %v2208 = vsel %vm2192, %v2184, %v2200
        %v2209 = vsel %vm2193, %v2185, %v2201
        %v2210 = vsel %vm2194, %v2186, %v2202
        %v2211 = vsel %vm2195, %v2187, %v2203
        %v2212 = vsel %vm2196, %v2188, %v2204
        %v2213 = vsel %vm2197, %v2189, %v2205
        %v2214 = vsel %vm2198, %v2190, %v2206
        %v2215 = vadd.f32 %v2207, 1.0
        %v2216 = vadd.f32 %v2208, 1.0
        %v2217 = vadd.f32 %v2209, 1.0
        %v2218 = vadd.f32 %v2210, 1.0
        %v2219 = vadd.f32 %v2211, 1.0
        %v2220 = vadd.f32 %v2212, 1.0
        %v2221 = vadd.f32 %v2213, 1.0
        %v2222 = vadd.f32 %v2214, 1.0
        %v2223 = vmul.f32 %v2015, %v2215
        %v2224 = vmul.f32 %v2016, %v2216
        %v2225 = vmul.f32 %v2017, %v2217
        %v2226 = vmul.f32 %v2018, %v2218
        %v2227 = vmul.f32 %v2019, %v2219
        %v2228 = vmul.f32 %v2020, %v2220
        %v2229 = vmul.f32 %v2021, %v2221
        %v2230 = vmul.f32 %v2022, %v2222
        %v2231 = vadd.f32 %v777, %v2223
        %v2232 = vadd.f32 %v778, %v2224
        %v2233 = vadd.f32 %v779, %v2225
        %v2234 = vadd.f32 %v780, %v2226
        %v2235 = vadd.f32 %v781, %v2227
        %v2236 = vadd.f32 %v782, %v2228
        %v2237 = vadd.f32 %v783, %v2229
        %v2238 = vadd.f32 %v784, %v2230
      $region61: #{residual_conv_block_forward.1} parent=55 // loop_footer
        %s776 = sadd.s32 1, %s772
      $region62: #{residual_conv_block_forward.1} parent=55 // loop_footer_branch
        %771 = sbr.rel target = $region58
      $region63: #{residual_conv_block_forward.1} parent=55 // loop_exit
        _
      %v2239 = vld [vmem:[%s7] sm:$0xf]
      %v2240 = vld [vmem:[%s7 + $0x4] sm:$0xf]
      %v2241 = vld [vmem:[%s7 + $0x8] sm:$0xf]
      %v2242 = vld [vmem:[%s7 + $0xc] sm:$0xf]
      %v2243 = vld [vmem:[%s7 + $0x10] sm:$0xf]
      %v2244 = vld [vmem:[%s7 + $0x14] sm:$0xf]
      %v2245 = vld [vmem:[%s7 + $0x18] sm:$0xf]
      %v2246 = vld [vmem:[%s7 + $0x1c] sm:$0xf]
      %v2247 = vld [vmem:[%s7 + $0x20] sm:$0xf]
      %v2248 = vld [vmem:[%s7 + $0x24] sm:$0xf]
      %v2249 = vld [vmem:[%s7 + $0x28] sm:$0xf]
      %v2250 = vld [vmem:[%s7 + $0x2c] sm:$0xf]
      %v2251 = vld [vmem:[%s7 + $0x30] sm:$0xf]
      %v2252 = vld [vmem:[%s7 + $0x34] sm:$0xf]
      %v2253 = vld [vmem:[%s7 + $0x38] sm:$0xf]
      %v2254 = vld [vmem:[%s7 + $0x3c] sm:$0xf]
      %v2255 = vld [vmem:[%s7 + $0x40] sm:$0xf]
      %v2256 = vld [vmem:[%s7 + $0x44] sm:$0xf]
      %v2257 = vld [vmem:[%s7 + $0x48] sm:$0xf]
      %v2258 = vld [vmem:[%s7 + $0x4c] sm:$0xf]
      %v2259 = vld [vmem:[%s8] sm:$0x1]
      %v2260 = vmul.f32 %v777, %v418
      %v2261 = vmul.f32 %v778, %v419
      %v2262 = vmul.f32 %v779, %v420
      %v2263 = vmul.f32 %v780, %v421
      %v2264 = vmul.f32 %v781, %v422
      %v2265 = vmul.f32 %v782, %v423
      %v2266 = vmul.f32 %v783, %v424
      %v2267 = vmul.f32 %v784, %v425
      %v2268 = vrot.slane %v2260, 6
      %v2269 = vrot.slane %v2261, 6
      %v2270 = vrot.slane %v2262, 6
      %v2271 = vrot.slane %v2263, 6
      %v2272 = vrot.slane %v2264, 6
      %v2273 = vrot.slane %v2265, 6
      %v2274 = vrot.slane %v2266, 6
      %v2275 = vrot.slane %v2267, 6
      %v2276 = vsel %vm446, %v2274, %v2275
      %v2277 = vsel %vm446, %v2273, %v2274
      %v2278 = vsel %vm446, %v2272, %v2273
      %v2279 = vsel %vm446, %v2271, %v2272
      %v2280 = vsel %vm446, %v2270, %v2271
      %v2281 = vsel %vm446, %v2269, %v2270
      %v2282 = vsel %vm446, %v2268, %v2269
      %v2283 = vsel %vm446, %v2275, %v2268
      %v2284 = vrot.slane %v2260, 7
      %v2285 = vrot.slane %v2261, 7
      %v2286 = vrot.slane %v2262, 7
      %v2287 = vrot.slane %v2263, 7
      %v2288 = vrot.slane %v2264, 7
      %v2289 = vrot.slane %v2265, 7
      %v2290 = vrot.slane %v2266, 7
      %v2291 = vrot.slane %v2267, 7
      %v2292 = vsel %vm463, %v2290, %v2291
      %v2293 = vsel %vm463, %v2289, %v2290
      %v2294 = vsel %vm463, %v2288, %v2289
      %v2295 = vsel %vm463, %v2287, %v2288
      %v2296 = vsel %vm463, %v2286, %v2287
      %v2297 = vsel %vm463, %v2285, %v2286
      %v2298 = vsel %vm463, %v2284, %v2285
      %v2299 = vsel %vm463, %v2291, %v2284
      %v2300 = vrot.slane %v2260, 1
      %v2301 = vrot.slane %v2261, 1
      %v2302 = vrot.slane %v2262, 1
      %v2303 = vrot.slane %v2263, 1
      %v2304 = vrot.slane %v2264, 1
      %v2305 = vrot.slane %v2265, 1
      %v2306 = vrot.slane %v2266, 1
      %v2307 = vrot.slane %v2267, 1
      %v2308 = vsel %vm480, %v2306, %v2307
      %v2309 = vsel %vm480, %v2305, %v2306
      %v2310 = vsel %vm480, %v2304, %v2305
      %v2311 = vsel %vm480, %v2303, %v2304
      %v2312 = vsel %vm480, %v2302, %v2303
      %v2313 = vsel %vm480, %v2301, %v2302
      %v2314 = vsel %vm480, %v2300, %v2301
      %v2315 = vsel %vm480, %v2307, %v2300
      %v2316 = vrot.slane %v2260, 2
      %v2317 = vrot.slane %v2261, 2
      %v2318 = vrot.slane %v2262, 2
      %v2319 = vrot.slane %v2263, 2
      %v2320 = vrot.slane %v2264, 2
      %v2321 = vrot.slane %v2265, 2
      %v2322 = vrot.slane %v2266, 2
      %v2323 = vrot.slane %v2267, 2
      %v2324 = vsel %vm497, %v2322, %v2323
      %v2325 = vsel %vm497, %v2321, %v2322
      %v2326 = vsel %vm497, %v2320, %v2321
      %v2327 = vsel %vm497, %v2319, %v2320
      %v2328 = vsel %vm497, %v2318, %v2319
      %v2329 = vsel %vm497, %v2317, %v2318
      %v2330 = vsel %vm497, %v2316, %v2317
      %v2331 = vsel %vm497, %v2323, %v2316
      %2340 = vrot.lane.b32.xlu0 %v2299, 32
      %v2341 = vpop.permute.xlu0 %2340
      %2342 = vrot.lane.b32.xlu0 %v2298, 32
      %v2343 = vpop.permute.xlu0 %2342
      %2344 = vrot.lane.b32.xlu0 %v2297, 32
      %v2345 = vpop.permute.xlu0 %2344
      %2346 = vrot.lane.b32.xlu0 %v2296, 32
      %v2347 = vpop.permute.xlu0 %2346
      %2348 = vrot.lane.b32.xlu0 %v2295, 32
      %v2349 = vpop.permute.xlu0 %2348
      %2350 = vrot.lane.b32.xlu0 %v2294, 32
      %v2351 = vpop.permute.xlu0 %2350
      %2352 = vrot.lane.b32.xlu0 %v2293, 32
      %v2353 = vpop.permute.xlu0 %2352
      %2354 = vrot.lane.b32.xlu0 %v2292, 32
      %v2355 = vpop.permute.xlu0 %2354
      %2372 = vrot.lane.b32.xlu0 %v2260, 64
      %v2373 = vpop.permute.xlu0 %2372
      %2374 = vrot.lane.b32.xlu0 %v2261, 64
      %v2375 = vpop.permute.xlu0 %2374
      %2376 = vrot.lane.b32.xlu0 %v2262, 64
      %v2377 = vpop.permute.xlu0 %2376
      %2378 = vrot.lane.b32.xlu0 %v2263, 64
      %v2379 = vpop.permute.xlu0 %2378
      %2380 = vrot.lane.b32.xlu0 %v2264, 64
      %v2381 = vpop.permute.xlu0 %2380
      %2382 = vrot.lane.b32.xlu0 %v2265, 64
      %v2383 = vpop.permute.xlu0 %2382
      %2384 = vrot.lane.b32.xlu0 %v2266, 64
      %v2385 = vpop.permute.xlu0 %2384
      %2386 = vrot.lane.b32.xlu0 %v2267, 64
      %v2387 = vpop.permute.xlu0 %2386
      %2404 = vrot.lane.b32.xlu0 %v2314, 96
      %v2405 = vpop.permute.xlu0 %2404
      %2406 = vrot.lane.b32.xlu0 %v2313, 96
      %v2407 = vpop.permute.xlu0 %2406
      %2408 = vrot.lane.b32.xlu0 %v2312, 96
      %v2409 = vpop.permute.xlu0 %2408
      %2410 = vrot.lane.b32.xlu0 %v2311, 96
      %v2411 = vpop.permute.xlu0 %2410
      %2412 = vrot.lane.b32.xlu0 %v2310, 96
      %v2413 = vpop.permute.xlu0 %2412
      %2414 = vrot.lane.b32.xlu0 %v2309, 96
      %v2415 = vpop.permute.xlu0 %2414
      %2416 = vrot.lane.b32.xlu0 %v2308, 96
      %v2417 = vpop.permute.xlu0 %2416
      %2418 = vrot.lane.b32.xlu0 %v2315, 96
      %v2419 = vpop.permute.xlu0 %2418
      %vm2428 = vcmask 261120
      %v2429 = vsel %vm2428, %v2283, %v2341
      %v2430 = vsel %vm2428, %v2282, %v2343
      %v2431 = vsel %vm2428, %v2281, %v2345
      %v2432 = vsel %vm2428, %v2280, %v2347
      %v2433 = vsel %vm2428, %v2279, %v2349
      %v2434 = vsel %vm2428, %v2278, %v2351
      %v2435 = vsel %vm2428, %v2277, %v2353
      %v2436 = vsel %vm2428, %v2276, %v2355
      %vm2437 = vcmask 523264
      %v2438 = vsel %vm2437, %v2429, %v2373
      %v2439 = vsel %vm2437, %v2430, %v2375
      %v2440 = vsel %vm2437, %v2431, %v2377
      %v2441 = vsel %vm2437, %v2432, %v2379
      %v2442 = vsel %vm2437, %v2433, %v2381
      %v2443 = vsel %vm2437, %v2434, %v2383
      %v2444 = vsel %vm2437, %v2435, %v2385
      %v2445 = vsel %vm2437, %v2436, %v2387
      %vm2446 = vcmask 785408
      %v2447 = vsel %vm2446, %v2438, %v2405
      %v2448 = vsel %vm2446, %v2439, %v2407
      %v2449 = vsel %vm2446, %v2440, %v2409
      %v2450 = vsel %vm2446, %v2441, %v2411
      %v2451 = vsel %vm2446, %v2442, %v2413
      %v2452 = vsel %vm2446, %v2443, %v2415
      %v2453 = vsel %vm2446, %v2444, %v2417
      %v2454 = vsel %vm2446, %v2445, %v2419
      %v2455 = vpack.c.bf16 %v2448, %v2447
      %v2456 = vpack.c.bf16 %v2329, %v2330
      %v2457 = vpack.c.bf16 %v2450, %v2449
      %v2458 = vpack.c.bf16 %v2327, %v2328
      %v2459 = vpack.c.bf16 %v2452, %v2451
      %v2460 = vpack.c.bf16 %v2325, %v2326
      %v2461 = vpack.c.bf16 %v2454, %v2453
      %v2462 = vpack.c.bf16 %v2331, %v2324
      %v2464 = vlaneseq
      %v2465 = vshrl.u32 %v2464, 7
      %v2466 = vsub.s32 0, %v2465
      %v2467 = vrot.slane %v2259, %v2466
      %v2489 = vunpack.c.l.b16 %v2239
      %v2490 = vunpack.c.l.b16 %v2240
      %v2491 = vunpack.c.l.b16 %v2241
      %v2492 = vunpack.c.l.b16 %v2242
      %v2493 = vunpack.c.l.b16 %v2243
      %v2494 = vunpack.c.l.b16 %v2244
      %v2495 = vunpack.c.l.b16 %v2245
      %v2496 = vunpack.c.l.b16 %v2246
      %v2497 = vunpack.c.l.b16 %v2247
      %v2498 = vunpack.c.l.b16 %v2248
      %v2499 = vunpack.c.l.b16 %v2249
      %v2500 = vunpack.c.l.b16 %v2250
      %v2501 = vunpack.c.l.b16 %v2251
      %v2502 = vunpack.c.l.b16 %v2252
      %v2503 = vunpack.c.l.b16 %v2253
      %v2504 = vunpack.c.l.b16 %v2254
      %v2505 = vunpack.c.l.b16 %v2255
      %v2506 = vunpack.c.l.b16 %v2256
      %v2507 = vunpack.c.l.b16 %v2257
      %v2508 = vunpack.c.l.b16 %v2258
      %v2509 = vpack.c.b16 %v2490, %v2489
      %v2510 = vpack.c.b16 %v2492, %v2491
      %v2511 = vpack.c.b16 %v2494, %v2493
      %v2512 = vpack.c.b16 %v2496, %v2495
      %v2513 = vpack.c.b16 %v2498, %v2497
      %v2514 = vpack.c.b16 %v2500, %v2499
      %v2515 = vpack.c.b16 %v2502, %v2501
      %v2516 = vpack.c.b16 %v2504, %v2503
      %v2517 = vpack.c.b16 %v2506, %v2505
      %v2518 = vpack.c.b16 %v2508, %v2507
      %v2530 = vsel %vm2428, %v2456, 0
      %v2533 = vsel %vm2428, %v2458, 0
      %v2536 = vsel %vm2428, %v2460, 0
      %v2539 = vsel %vm2428, %v2462, 0
      %2541 = vmatprep.subr.bf16.mxu0 0
      %2542 = vmatpush1.bf16.msra.mxu0 %v2509
      %2543 = vmatprep.subr.bf16.mxu0 0
      %2544 = vmatpush1.bf16.msra.mxu0 %v2510
      %2545 = vmatprep.subr.bf16.mxu0 0
      %2546 = vmatpush1.bf16.msra.mxu0 %v2511
      %2547 = vmatprep.subr.bf16.mxu0 0
      %2548 = vmatpush1.bf16.msra.mxu0 %v2512
      %2549 = vmatprep.subr.bf16.mxu0 0
      %2550 = vmatpush1.bf16.msra.mxu0 %v2513
      %2551 = vmatprep.subr.bf16.mxu0 0
      %2552 = vmatpush1.bf16.msra.mxu0 %v2514
      %2553 = vmatprep.subr.bf16.mxu0 0
      %2554 = vmatpush1.bf16.msra.mxu0 %v2515
      %2555 = vmatprep.subr.bf16.mxu0 0
      %2556 = vmatpush1.bf16.msra.mxu0 %v2516
      %2557 = vmatprep.subr.bf16.mxu0 0
      %2558 = vmatpush1.bf16.msra.mxu0 %v2517
      %2559 = vmatprep.subr.bf16.mxu0 0
      %2560 = vmatpush1.bf16.msra.mxu0 %v2518
      %2561 = vmatprep.subr.bf16.mxu0 0
      %2562 = vmatpush1.bf16.msra.mxu0 0
      %2563 = vmatprep.subr.bf16.mxu0 0
      %2564 = vmatpush1.bf16.msra.mxu0 0
      %2565 = vmatprep.subr.bf16.mxu0 0
      %2566 = vmatpush1.bf16.msra.mxu0 0
      %2567 = vmatprep.subr.bf16.mxu0 0
      %2568 = vmatpush1.bf16.msra.mxu0 0
      %2569 = vmatprep.subr.bf16.mxu0 0
      %2570 = vmatpush1.bf16.msra.mxu0 0
      %2571 = vmatprep.subr.bf16.mxu0 0
      %2572 = vmatpush1.bf16.msra.mxu0 0
      %2573 = vmatprep.mubr.bf16.mxu0 %v2530
      %2574 = vmatmul.mubr.bf16.gmra.mrb[0].mxu0 %v2455
      %v2575 = vpop.f32.mrb[0].mxu0
      %v2576 = vpop.f32.mrb[0].mxu0
      %v2577 = vpop.f32.mrb[0].mxu0
      %v2578 = vpop.f32.mrb[0].mxu0
      %2579 = vmatprep.mubr.bf16.mxu0 %v2533
      %2580 = vmatmul.mubr.bf16.gmra.mrb[0].mxu0 %v2457
      %v2581 = vpop.f32.mrb[0].mxu0
      %v2582 = vpop.f32.mrb[0].mxu0
      %v2583 = vpop.f32.mrb[0].mxu0
      %v2584 = vadd.f32 %v2467, %v2583
      %v2585 = vpop.f32.mrb[0].mxu0
      %2586 = vmatprep.mubr.bf16.mxu0 %v2536
      %2587 = vmatmul.mubr.bf16.gmra.mrb[0].mxu0 %v2459
      %v2588 = vpop.f32.mrb[0].mxu0
      %v2589 = vadd.f32 %v2467, %v2588
      %v2590 = vpop.f32.mrb[0].mxu0
      %v2591 = vpop.f32.mrb[0].mxu0
      %v2592 = vpop.f32.mrb[0].mxu0
      %2593 = vmatprep.mubr.bf16.mxu0 %v2539
      %2594 = vmatmul.mubr.bf16.gmra.mrb[0].mxu0 %v2461
      %v2595 = vpop.f32.mrb[0].mxu0
      %v2596 = vpop.f32.mrb[0].mxu0
      %v2597 = vpop.f32.mrb[0].mxu0
      %v2598 = vpop.f32.mrb[0].mxu0
      %2599 = vdwg.mxu0
      %2600 = vst [vmem:[%s354] sm:$0xff] %v2584
      %2601 = vst [vmem:[%s354 + $0x8] sm:$0xff] %v2589
      %s2602 = smul.u32 2, %s25
      %p2603 = scmp.lt.s32.totalorder %s24, 1
      %s2604 = scalar_select %p2603, %s24, 1
      %p2605 = scmp.lt.s32.totalorder %s2602, 1
      %s2606 = scalar_select %p2605, %s2602, 1
      %s2607 = smul.addr %s2604, 2
      %s2608 = sadd.s32 %s2606, %s2607
      %s2609 = smul.addr %s2608, 8
      %s2610 = scalar_lea.vmem %s9, %s2609
      // Predicated region
      $region64: #{residual_conv_block_forward.1} parent=55 // pred_check
        %p2611 = pneg %p246
      $region65: #{residual_conv_block_forward.1} parent=55 // pred_check_branch
        %2613 = sbr.rel (%p2611) target = $region67
      $region66: #{residual_conv_block_forward.1} parent=55 // pred_region
        %s2614 = smul.u32 2, %s25
      $region67: #{residual_conv_block_forward.1} parent=55 // pred_fallthru
        _
    $region56: #{residual_conv_block_forward.1} parent=5 // pred_fallthru
      _
    %p2615 = scmp.le.s32.totalorder 2, %s15
    // Predicated region
    $region68: #{residual_conv_block_forward.1} parent=5 // pred_check
      %p2616 = pneg %p2615
    $region69: #{residual_conv_block_forward.1} parent=5 // pred_check_branch
      %2618 = sbr.rel (%p2616) target = $region71
    $region70: #{residual_conv_block_forward.1} parent=5 // pred_region
      %s2619 = ssub.s32 %s15, 2
      // Predicated region
      $region72: #{residual_conv_block_forward.1} parent=70 // pred_check
        %p2620 = pneg %p252
      $region73: #{residual_conv_block_forward.1} parent=70 // pred_check_branch
        %2622 = sbr.rel (%p2620) target = $region75
      $region74: #{residual_conv_block_forward.1} parent=70 // pred_region
        %s2623 = smul.u32 2, %s27
        %p2624 = scmp.lt.s32.totalorder %s26, 1
        %s2625 = scalar_select %p2624, %s26, 1
        %p2626 = scmp.lt.s32.totalorder %s2623, 1
        %s2627 = scalar_select %p2626, %s2623, 1
        %s2628 = smul.addr %s2625, 2
        %s2629 = sadd.s32 %s2627, %s2628
        %s2630 = smul.addr %s2629, 8
        %s2631 = scalar_lea.vmem %s9, %s2630
      $region75: #{residual_conv_block_forward.1} parent=70 // pred_fallthru
        _
    $region71: #{residual_conv_block_forward.1} parent=5 // pred_fallthru
      _
  $region6: #{residual_conv_block_forward.1} parent=0 // loop_footer
    %s19 = sadd.s32 1, %s15
  $region7: #{residual_conv_block_forward.1} parent=0 // loop_footer_branch
    %14 = sbr.rel target = $region3
  $region8: #{residual_conv_block_forward.1} parent=0 // loop_exit
    _

</llo_original>
